<compile_context>
chip_gen: v7x
topology: tpu7x:2x2x1
jax: 0.10.0
libtpu: 0.0.40
codegen_flags: <defaults>
</compile_context>

<pallas_src>
import numpy as np
import jax
import jax.numpy as jnp
from jax import lax
from jax.experimental import pallas as pl
from jax.experimental.pallas import tpu as pltpu

_LN_EPS = 1e-5  # torch.nn.LayerNorm default


def _ffn_kernel(x_ref, w1_ref, b1_ref, w2_ref, b2_ref, gamma_ref, beta_ref,
                out_ref, acc_ref):
    # x_ref:      (tm, D)  f32 token tile (resident across the F axis)
    # w1_ref:     (D, tf)  bf16            b1_ref: (1, tf) f32
    # w2_ref:     (tf, D)  bf16            b2_ref: (1, D)  f32
    # gamma/beta: (1, D)   f32             out_ref: (tm, D) f32
    # acc_ref:    (tm, D)  f32 VMEM scratch accumulator (second matmul).
    f = pl.program_id(1)

    @pl.when(f == 0)
    def _():
        acc_ref[...] = jnp.zeros_like(acc_ref)

    x = x_ref[...]

    # First linear (bf16 MXU inputs, f32 accumulation) + bias + ReLU in f32.
    h = jnp.dot(x.astype(jnp.bfloat16), w1_ref[...],
                preferred_element_type=jnp.float32) + b1_ref[...]
    h = jnp.maximum(h, 0.0)

    # Second linear: accumulate this F-tile's contribution back to model_dim.
    acc_ref[...] += jnp.dot(h.astype(jnp.bfloat16), w2_ref[...],
                            preferred_element_type=jnp.float32)

    @pl.when(f == pl.num_programs(1) - 1)
    def _():
        o = acc_ref[...] + b2_ref[...]
        # Dropout with p=0.0 is the identity in the forward pass.
        y = x + o  # residual
        mean = jnp.mean(y, axis=-1, keepdims=True)
        centered = y - mean
        var = jnp.mean(centered * centered, axis=-1, keepdims=True)
        inv_std = lax.rsqrt(var + _LN_EPS)
        out_ref[...] = (centered * inv_std) * gamma_ref[...] + beta_ref[...]


def _round_up(n, m):
    return ((n + m - 1) // m) * m


def position_wise_ffn_revise(x, w1, b1, w2, b2, gamma, beta, *, tm_max=512):
    """x: (B, S, D) f32. w1: (D, 4D), b1: (4D,), w2: (4D, D), b2/gamma/beta: (D,)."""
    B, S, D = x.shape
    F = w1.shape[1]
    assert w1.shape == (D, F) and w2.shape == (F, D)

    N = B * S
    x_flat = x.reshape(N, D)  # free reshape (no copy)

    # --- F tiling: keep per-step bf16 weight tiles within a VMEM budget. ------
    weight_budget = 16 << 20  # bytes of bf16 W1+W2 tile per F-step
    tf = F
    while (4 * D * tf) > weight_budget and tf % 256 == 0:
        tf //= 2
    nf = F // tf

    # --- token tile: big, lane-dense, with bounded hidden-activation spill. ---
    tm_cap = tm_max
    while tm_cap > 128 and tm_cap * tf * 4 > (8 << 20):
        tm_cap //= 2
    tm = N if N <= tm_cap else tm_cap        # tm == N (full dim) or a multiple of 8
    grid = (pl.cdiv(N, tm), nf)

    w1_b = w1.astype(jnp.bfloat16)
    w2_b = w2.astype(jnp.bfloat16)
    b1_r = b1.reshape(1, F).astype(jnp.float32)
    b2_r = b2.reshape(1, D).astype(jnp.float32)
    gamma_r = gamma.reshape(1, D).astype(jnp.float32)
    beta_r = beta.reshape(1, D).astype(jnp.float32)

    cost = pl.CostEstimate(
        flops=int(4 * N * D * F),
        transcendentals=int(N),
        bytes_accessed=int(2 * N * D * 4 + 2 * D * F * 2 + (F + 3 * D) * 4),
    )

    def _vmem_limit(single_buffer):
        w_bufs = 1 if (nf == 1 and single_buffer) else 2
        weights = w_bufs * 2 * D * tf * 2          # W1 + W2 tiles, bf16
        small = 2 * (tf + 3 * D) * 4               # biases / gamma / beta
        io = 4 * tm * D * 4                        # x + out, double-buffered
        acc = tm * D * 4                           # accumulator scratch
        hidden = 2 * tm * tf * 4                   # f32 h + bf16 copy (upper bound)
        total = int((weights + small + io + acc + hidden) * 1.4) + (4 << 20)
        total = max(total, 32 << 20)
        try:
            phys = pltpu.get_tpu_info().vmem_capacity_bytes
        except Exception:
            phys = 64 << 20                        # conservative: v7x per-TC VMEM
        return int(min(total, phys * 7 // 8))

    def _run(single_buffer):
        def spec(shape, index_map, is_const):
            if single_buffer and is_const:
                # Constant-index operand: no need to double-buffer it.
                return pl.BlockSpec(shape, index_map, pipeline_mode=pl.Buffered(1))
            return pl.BlockSpec(shape, index_map)

        in_specs = [
            pl.BlockSpec((tm, D), lambda i, f: (i, 0)),          # x token tile
            spec((D, tf), lambda i, f: (0, f), nf == 1),         # W1 tile
            spec((1, tf), lambda i, f: (0, f), nf == 1),         # b1 tile
            spec((tf, D), lambda i, f: (f, 0), nf == 1),         # W2 tile
            spec((1, D), lambda i, f: (0, 0), True),             # b2
            spec((1, D), lambda i, f: (0, 0), True),             # gamma
            spec((1, D), lambda i, f: (0, 0), True),             # beta
        ]
        return pl.pallas_call(
            _ffn_kernel,
            out_shape=jax.ShapeDtypeStruct((N, D), jnp.float32),
            grid_spec=pltpu.PrefetchScalarGridSpec(
                num_scalar_prefetch=0,
                grid=grid,
                in_specs=in_specs,
                out_specs=pl.BlockSpec((tm, D), lambda i, f: (i, 0)),
                scratch_shapes=[pltpu.VMEM((tm, D), jnp.float32)],
            ),
            compiler_params=pltpu.CompilerParams(
                dimension_semantics=("parallel", "arbitrary"),
                vmem_limit_bytes=_vmem_limit(single_buffer),
            ),
            cost_estimate=cost,
        )(x_flat, w1_b, b1_r, w2_b, b2_r, gamma_r, beta_r)

    try:
        out_flat = _run(True)
    except Exception:
        # pl.Buffered(1) single-buffering unsupported on this jax/Mosaic version;
        # fall back to default pipelining (still correct, just more VMEM).
        out_flat = _run(False)

    return out_flat.reshape(B, S, D)


def _reference(x, w1, b1, w2, b2, gamma, beta):
    h = jnp.maximum(jnp.dot(x, w1, preferred_element_type=jnp.float32) + b1, 0.0)
    o = jnp.dot(h, w2, preferred_element_type=jnp.float32) + b2
    y = x + o
    mean = jnp.mean(y, axis=-1, keepdims=True)
    var = jnp.mean((y - mean) ** 2, axis=-1, keepdims=True)
    return (y - mean) * lax.rsqrt(var + _LN_EPS) * gamma + beta


if __name__ == "__main__":
    # Small, deterministic example shapes consistent with the module.
    batch, seq, model_dim = 2, 8, 128
    dff = model_dim * 4

    key = jax.random.PRNGKey(0)
    kx, kw1, kb1, kw2, kb2, kg, kbt = jax.random.split(key, 7)

    x = jax.random.normal(kx, (batch, seq, model_dim), dtype=jnp.float32)
    w1 = jax.random.normal(kw1, (model_dim, dff), dtype=jnp.float32) * (1.0 / np.sqrt(model_dim))
    b1 = jax.random.normal(kb1, (dff,), dtype=jnp.float32) * 0.05
    w2 = jax.random.normal(kw2, (dff, model_dim), dtype=jnp.float32) * (1.0 / np.sqrt(dff))
    b2 = jax.random.normal(kb2, (model_dim,), dtype=jnp.float32) * 0.05
    gamma = 1.0 + 0.1 * jax.random.normal(kg, (model_dim,), dtype=jnp.float32)
    beta = 0.1 * jax.random.normal(kbt, (model_dim,), dtype=jnp.float32)

    out = position_wise_ffn_revise(x, w1, b1, w2, b2, gamma, beta)
    out = jax.block_until_ready(out)

    ref = _reference(x, w1, b1, w2, b2, gamma, beta)
    assert out.shape == (batch, seq, model_dim)
    assert out.dtype == jnp.float32
    # bf16 MXU inputs -> relaxed tolerance vs the pure-f32 reference.
    np.testing.assert_allclose(np.asarray(out), np.asarray(ref), rtol=2e-2, atol=2e-2)

    print("KERNEL_OK")
</pallas_src>

<mosaic_0001>
module attributes {stable_mosaic.version = 11 : i64} {
  func.func @_ffn_kernel(%arg0: i32, %arg1: i32, %arg2: memref<16x128xf32, #tpu.memory_space<vmem>>, %arg3: memref<128x512xbf16, #tpu.memory_space<vmem>>, %arg4: memref<1x512xf32, #tpu.memory_space<vmem>>, %arg5: memref<512x128xbf16, #tpu.memory_space<vmem>>, %arg6: memref<1x128xf32, #tpu.memory_space<vmem>>, %arg7: memref<1x128xf32, #tpu.memory_space<vmem>>, %arg8: memref<1x128xf32, #tpu.memory_space<vmem>>, %arg9: memref<16x128xf32, #tpu.memory_space<vmem>>, %arg10: memref<16x128xf32, #tpu.memory_space<vmem>>) attributes {dimension_semantics = [#tpu.dimension_semantics<parallel>, #tpu.dimension_semantics<arbitrary>], iteration_bounds = array<i64: 1, 1>, scalar_prefetch = 0 : i64, scratch_operands = 1 : i64, tpu.core_type = #tpu.core_type<tc>, window_params = [{transform_indices = @transform_0, window_bounds = array<i64: 16, 128>}, {pipeline_mode = #tpu.pipeline_mode<synchronous>, transform_indices = @transform_1, window_bounds = array<i64: 128, 512>}, {pipeline_mode = #tpu.pipeline_mode<synchronous>, transform_indices = @transform_2, window_bounds = array<i64: 1, 512>}, {pipeline_mode = #tpu.pipeline_mode<synchronous>, transform_indices = @transform_3, window_bounds = array<i64: 512, 128>}, {pipeline_mode = #tpu.pipeline_mode<synchronous>, transform_indices = @transform_4, window_bounds = array<i64: 1, 128>}, {pipeline_mode = #tpu.pipeline_mode<synchronous>, transform_indices = @transform_5, window_bounds = array<i64: 1, 128>}, {pipeline_mode = #tpu.pipeline_mode<synchronous>, transform_indices = @transform_6, window_bounds = array<i64: 1, 128>}, {transform_indices = @transform_7, window_bounds = array<i64: 16, 128>}]} {
    %c0_i32 = arith.constant 0 : i32
    %0 = arith.cmpi eq, %arg1, %c0_i32 : i32
    %1 = arith.extui %0 : i1 to i32
    %c0_i32_0 = arith.constant 0 : i32
    %2 = arith.cmpi ne, %1, %c0_i32_0 : i32
    scf.if %2 {
      %cst_16 = arith.constant 0.000000e+00 : f32
      %21 = vector.broadcast %cst_16 : f32 to vector<16x128xf32>
      %c0_17 = arith.constant 0 : index
      %c0_18 = arith.constant 0 : index
      %22 = vector.load %arg10[%c0_17, %c0_18] : memref<16x128xf32, #tpu.memory_space<vmem>>, vector<16x128xf32>
      tpu.vector_store %arg10[%c0_17, %c0_18], %21 {strides = array<i32>} : memref<16x128xf32, #tpu.memory_space<vmem>>, vector<16x128xf32>,
    } else {
    }
    %c0 = arith.constant 0 : index
    %c0_1 = arith.constant 0 : index
    %3 = vector.load %arg2[%c0, %c0_1] : memref<16x128xf32, #tpu.memory_space<vmem>>, vector<16x128xf32>
    %4 = arith.truncf %3 : vector<16x128xf32> to vector<16x128xbf16>
    %c0_2 = arith.constant 0 : index
    %c0_3 = arith.constant 0 : index
    %5 = vector.load %arg3[%c0_2, %c0_3] : memref<128x512xbf16, #tpu.memory_space<vmem>>, vector<128x512xbf16>
    %cst = arith.constant dense<0.000000e+00> : vector<16x512xf32>
    %6 = tpu.matmul %4, %5, %cst {dimension_numbers = #tpu.dot_dimension_numbers<[1], [0], [0], [1], [0, 0, 1, 1], [], []>} : vector<16x128xbf16>, vector<128x512xbf16>, vector<16x512xf32> -> vector<16x512xf32>
    %c0_4 = arith.constant 0 : index
    %c0_5 = arith.constant 0 : index
    %7 = vector.load %arg4[%c0_4, %c0_5] : memref<1x512xf32, #tpu.memory_space<vmem>>, vector<1x512xf32>
    %8 = vector.broadcast %7 : vector<1x512xf32> to vector<16x512xf32>
    %9 = arith.addf %6, %8 : vector<16x512xf32>
    %cst_6 = arith.constant 0.000000e+00 : f32
    %10 = vector.broadcast %cst_6 : f32 to vector<16x512xf32>
    %11 = arith.maximumf %9, %10 : vector<16x512xf32>
    %c0_7 = arith.constant 0 : index
    %c0_8 = arith.constant 0 : index
    %12 = vector.load %arg10[%c0_7, %c0_8] : memref<16x128xf32, #tpu.memory_space<vmem>>, vector<16x128xf32>
    %13 = arith.truncf %11 : vector<16x512xf32> to vector<16x512xbf16>
    %c0_9 = arith.constant 0 : index
    %c0_10 = arith.constant 0 : index
    %14 = vector.load %arg5[%c0_9, %c0_10] : memref<512x128xbf16, #tpu.memory_space<vmem>>, vector<512x128xbf16>
    %cst_11 = arith.constant dense<0.000000e+00> : vector<16x128xf32>
    %15 = tpu.matmul %13, %14, %cst_11 {dimension_numbers = #tpu.dot_dimension_numbers<[1], [0], [0], [1], [0, 0, 1, 1], [], []>} : vector<16x512xbf16>, vector<512x128xbf16>, vector<16x128xf32> -> vector<16x128xf32>
    %16 = arith.addf %12, %15 : vector<16x128xf32>
    %c0_12 = arith.constant 0 : index
    %c0_13 = arith.constant 0 : index
    %17 = vector.load %arg10[%c0_12, %c0_13] : memref<16x128xf32, #tpu.memory_space<vmem>>, vector<16x128xf32>
    tpu.vector_store %arg10[%c0_12, %c0_13], %16 {strides = array<i32>} : memref<16x128xf32, #tpu.memory_space<vmem>>, vector<16x128xf32>,
    %c0_i32_14 = arith.constant 0 : i32
    %18 = arith.cmpi eq, %arg1, %c0_i32_14 : i32
    %19 = arith.extui %18 : i1 to i32
    %c0_i32_15 = arith.constant 0 : i32
    %20 = arith.cmpi ne, %19, %c0_i32_15 : i32
    scf.if %20 {
      %c0_16 = arith.constant 0 : index
      %c0_17 = arith.constant 0 : index
      %21 = vector.load %arg10[%c0_16, %c0_17] : memref<16x128xf32, #tpu.memory_space<vmem>>, vector<16x128xf32>
      %c0_18 = arith.constant 0 : index
      %c0_19 = arith.constant 0 : index
      %22 = vector.load %arg6[%c0_18, %c0_19] : memref<1x128xf32, #tpu.memory_space<vmem>>, vector<1x128xf32>
      %23 = vector.broadcast %22 : vector<1x128xf32> to vector<16x128xf32>
      %24 = arith.addf %21, %23 : vector<16x128xf32>
      %25 = arith.addf %3, %24 : vector<16x128xf32>
      %cst_20 = arith.constant dense<0.000000e+00> : vector<16xf32>
      %26 = vector.multi_reduction <add>, %25, %cst_20 [1] : vector<16x128xf32> to vector<16xf32>
      %27 = vector.shape_cast %26 : vector<16xf32> to vector<16x1xf32>
      %cst_21 = arith.constant 1.280000e+02 : f32
      %28 = vector.broadcast %cst_21 : f32 to vector<16x1xf32>
      %29 = arith.divf %27, %28 : vector<16x1xf32>
      %30 = vector.broadcast %29 : vector<16x1xf32> to vector<16x128xf32>
      %31 = arith.subf %25, %30 : vector<16x128xf32>
      %32 = arith.mulf %31, %31 : vector<16x128xf32>
      %cst_22 = arith.constant dense<0.000000e+00> : vector<16xf32>
      %33 = vector.multi_reduction <add>, %32, %cst_22 [1] : vector<16x128xf32> to vector<16xf32>
      %34 = vector.shape_cast %33 : vector<16xf32> to vector<16x1xf32>
      %cst_23 = arith.constant 1.280000e+02 : f32
      %35 = vector.broadcast %cst_23 : f32 to vector<16x1xf32>
      %36 = arith.divf %34, %35 : vector<16x1xf32>
      %cst_24 = arith.constant 9.99999974E-6 : f32
      %37 = vector.broadcast %cst_24 : f32 to vector<16x1xf32>
      %38 = arith.addf %36, %37 : vector<16x1xf32>
      %39 = math.rsqrt %38 : vector<16x1xf32>
      %40 = vector.broadcast %39 : vector<16x1xf32> to vector<16x128xf32>
      %41 = arith.mulf %31, %40 : vector<16x128xf32>
      %c0_25 = arith.constant 0 : index
      %c0_26 = arith.constant 0 : index
      %42 = vector.load %arg7[%c0_25, %c0_26] : memref<1x128xf32, #tpu.memory_space<vmem>>, vector<1x128xf32>
      %43 = vector.broadcast %42 : vector<1x128xf32> to vector<16x128xf32>
      %44 = arith.mulf %41, %43 : vector<16x128xf32>
      %c0_27 = arith.constant 0 : index
      %c0_28 = arith.constant 0 : index
      %45 = vector.load %arg8[%c0_27, %c0_28] : memref<1x128xf32, #tpu.memory_space<vmem>>, vector<1x128xf32>
      %46 = vector.broadcast %45 : vector<1x128xf32> to vector<16x128xf32>
      %47 = arith.addf %44, %46 : vector<16x128xf32>
      %c0_29 = arith.constant 0 : index
      %c0_30 = arith.constant 0 : index
      %48 = vector.load %arg9[%c0_29, %c0_30] : memref<16x128xf32, #tpu.memory_space<vmem>>, vector<16x128xf32>
      tpu.vector_store %arg9[%c0_29, %c0_30], %47 {strides = array<i32>} : memref<16x128xf32, #tpu.memory_space<vmem>>, vector<16x128xf32>,
    } else {
    }
    return
  }
  func.func @transform_0(%arg0: i32, %arg1: i32) -> (i32, i32) {
    %c0_i32 = arith.constant 0 : i32
    %c0_i32_0 = arith.constant 0 : i32
    return %arg0, %c0_i32 : i32, i32
  }
  func.func @transform_1(%arg0: i32, %arg1: i32) -> (i32, i32) {
    %c0_i32 = arith.constant 0 : i32
    %c0_i32_0 = arith.constant 0 : i32
    return %c0_i32, %arg1 : i32, i32
  }
  func.func @transform_2(%arg0: i32, %arg1: i32) -> (i32, i32) {
    %c0_i32 = arith.constant 0 : i32
    %c0_i32_0 = arith.constant 0 : i32
    return %c0_i32, %arg1 : i32, i32
  }
  func.func @transform_3(%arg0: i32, %arg1: i32) -> (i32, i32) {
    %c0_i32 = arith.constant 0 : i32
    %c0_i32_0 = arith.constant 0 : i32
    return %arg1, %c0_i32 : i32, i32
  }
  func.func @transform_4(%arg0: i32, %arg1: i32) -> (i32, i32) {
    %c0_i32 = arith.constant 0 : i32
    %c0_i32_0 = arith.constant 0 : i32
    %c0_i32_1 = arith.constant 0 : i32
    return %c0_i32, %c0_i32_0 : i32, i32
  }
  func.func @transform_5(%arg0: i32, %arg1: i32) -> (i32, i32) {
    %c0_i32 = arith.constant 0 : i32
    %c0_i32_0 = arith.constant 0 : i32
    %c0_i32_1 = arith.constant 0 : i32
    return %c0_i32, %c0_i32_0 : i32, i32
  }
  func.func @transform_6(%arg0: i32, %arg1: i32) -> (i32, i32) {
    %c0_i32 = arith.constant 0 : i32
    %c0_i32_0 = arith.constant 0 : i32
    %c0_i32_1 = arith.constant 0 : i32
    return %c0_i32, %c0_i32_0 : i32, i32
  }
  func.func @transform_7(%arg0: i32, %arg1: i32) -> (i32, i32) {
    %c0_i32 = arith.constant 0 : i32
    %c0_i32_0 = arith.constant 0 : i32
    return %arg0, %c0_i32 : i32, i32
  }
}

module attributes {stable_mosaic.version = 11 : i64} {
  func.func @_ffn_kernel(%arg0: i32, %arg1: i32, %arg2: memref<16x128xf32, #tpu.memory_space<vmem>>, %arg3: memref<128x512xbf16, #tpu.memory_space<vmem>>, %arg4: memref<1x512xf32, #tpu.memory_space<vmem>>, %arg5: memref<512x128xbf16, #tpu.memory_space<vmem>>, %arg6: memref<1x128xf32, #tpu.memory_space<vmem>>, %arg7: memref<1x128xf32, #tpu.memory_space<vmem>>, %arg8: memref<1x128xf32, #tpu.memory_space<vmem>>, %arg9: memref<16x128xf32, #tpu.memory_space<vmem>>, %arg10: memref<16x128xf32, #tpu.memory_space<vmem>>) attributes {dimension_semantics = [#tpu.dimension_semantics<parallel>, #tpu.dimension_semantics<arbitrary>], iteration_bounds = array<i64: 1, 1>, scalar_prefetch = 0 : i64, scratch_operands = 1 : i64, tpu.core_type = #tpu.core_type<tc>, window_params = [{transform_indices = @transform_0, window_bounds = array<i64: 16, 128>}, {transform_indices = @transform_1, window_bounds = array<i64: 128, 512>}, {transform_indices = @transform_2, window_bounds = array<i64: 1, 512>}, {transform_indices = @transform_3, window_bounds = array<i64: 512, 128>}, {pipeline_mode = #tpu.pipeline_mode<synchronous>, transform_indices = @transform_4, window_bounds = array<i64: 1, 128>}, {pipeline_mode = #tpu.pipeline_mode<synchronous>, transform_indices = @transform_5, window_bounds = array<i64: 1, 128>}, {pipeline_mode = #tpu.pipeline_mode<synchronous>, transform_indices = @transform_6, window_bounds = array<i64: 1, 128>}, {transform_indices = @transform_7, window_bounds = array<i64: 16, 128>}]} {
    %c0_i32 = arith.constant 0 : i32
    %0 = arith.cmpi eq, %arg1, %c0_i32 : i32
    %1 = arith.extui %0 : i1 to i32
    %c0_i32_0 = arith.constant 0 : i32
    %2 = arith.cmpi ne, %1, %c0_i32_0 : i32
    scf.if %2 {
      %cst_16 = arith.constant 0.000000e+00 : f32
      %21 = vector.broadcast %cst_16 : f32 to vector<16x128xf32>
      %c0_17 = arith.constant 0 : index
      %c0_18 = arith.constant 0 : index
      %22 = vector.load %arg10[%c0_17, %c0_18] : memref<16x128xf32, #tpu.memory_space<vmem>>, vector<16x128xf32>
      tpu.vector_store %arg10[%c0_17, %c0_18], %21 {strides = array<i32>} : memref<16x128xf32, #tpu.memory_space<vmem>>, vector<16x128xf32>,
    } else {
    }
    %c0 = arith.constant 0 : index
    %c0_1 = arith.constant 0 : index
    %3 = vector.load %arg2[%c0, %c0_1] : memref<16x128xf32, #tpu.memory_space<vmem>>, vector<16x128xf32>
    %4 = arith.truncf %3 : vector<16x128xf32> to vector<16x128xbf16>
    %c0_2 = arith.constant 0 : index
    %c0_3 = arith.constant 0 : index
    %5 = vector.load %arg3[%c0_2, %c0_3] : memref<128x512xbf16, #tpu.memory_space<vmem>>, vector<128x512xbf16>
    %cst = arith.constant dense<0.000000e+00> : vector<16x512xf32>
    %6 = tpu.matmul %4, %5, %cst {dimension_numbers = #tpu.dot_dimension_numbers<[1], [0], [0], [1], [0, 0, 1, 1], [], []>} : vector<16x128xbf16>, vector<128x512xbf16>, vector<16x512xf32> -> vector<16x512xf32>
    %c0_4 = arith.constant 0 : index
    %c0_5 = arith.constant 0 : index
    %7 = vector.load %arg4[%c0_4, %c0_5] : memref<1x512xf32, #tpu.memory_space<vmem>>, vector<1x512xf32>
    %8 = vector.broadcast %7 : vector<1x512xf32> to vector<16x512xf32>
    %9 = arith.addf %6, %8 : vector<16x512xf32>
    %cst_6 = arith.constant 0.000000e+00 : f32
    %10 = vector.broadcast %cst_6 : f32 to vector<16x512xf32>
    %11 = arith.maximumf %9, %10 : vector<16x512xf32>
    %c0_7 = arith.constant 0 : index
    %c0_8 = arith.constant 0 : index
    %12 = vector.load %arg10[%c0_7, %c0_8] : memref<16x128xf32, #tpu.memory_space<vmem>>, vector<16x128xf32>
    %13 = arith.truncf %11 : vector<16x512xf32> to vector<16x512xbf16>
    %c0_9 = arith.constant 0 : index
    %c0_10 = arith.constant 0 : index
    %14 = vector.load %arg5[%c0_9, %c0_10] : memref<512x128xbf16, #tpu.memory_space<vmem>>, vector<512x128xbf16>
    %cst_11 = arith.constant dense<0.000000e+00> : vector<16x128xf32>
    %15 = tpu.matmul %13, %14, %cst_11 {dimension_numbers = #tpu.dot_dimension_numbers<[1], [0], [0], [1], [0, 0, 1, 1], [], []>} : vector<16x512xbf16>, vector<512x128xbf16>, vector<16x128xf32> -> vector<16x128xf32>
    %16 = arith.addf %12, %15 : vector<16x128xf32>
    %c0_12 = arith.constant 0 : index
    %c0_13 = arith.constant 0 : index
    %17 = vector.load %arg10[%c0_12, %c0_13] : memref<16x128xf32, #tpu.memory_space<vmem>>, vector<16x128xf32>
    tpu.vector_store %arg10[%c0_12, %c0_13], %16 {strides = array<i32>} : memref<16x128xf32, #tpu.memory_space<vmem>>, vector<16x128xf32>,
    %c0_i32_14 = arith.constant 0 : i32
    %18 = arith.cmpi eq, %arg1, %c0_i32_14 : i32
    %19 = arith.extui %18 : i1 to i32
    %c0_i32_15 = arith.constant 0 : i32
    %20 = arith.cmpi ne, %19, %c0_i32_15 : i32
    scf.if %20 {
      %c0_16 = arith.constant 0 : index
      %c0_17 = arith.constant 0 : index
      %21 = vector.load %arg10[%c0_16, %c0_17] : memref<16x128xf32, #tpu.memory_space<vmem>>, vector<16x128xf32>
      %c0_18 = arith.constant 0 : index
      %c0_19 = arith.constant 0 : index
      %22 = vector.load %arg6[%c0_18, %c0_19] : memref<1x128xf32, #tpu.memory_space<vmem>>, vector<1x128xf32>
      %23 = vector.broadcast %22 : vector<1x128xf32> to vector<16x128xf32>
      %24 = arith.addf %21, %23 : vector<16x128xf32>
      %25 = arith.addf %3, %24 : vector<16x128xf32>
      %cst_20 = arith.constant dense<0.000000e+00> : vector<16xf32>
      %26 = vector.multi_reduction <add>, %25, %cst_20 [1] : vector<16x128xf32> to vector<16xf32>
      %27 = vector.shape_cast %26 : vector<16xf32> to vector<16x1xf32>
      %cst_21 = arith.constant 1.280000e+02 : f32
      %28 = vector.broadcast %cst_21 : f32 to vector<16x1xf32>
      %29 = arith.divf %27, %28 : vector<16x1xf32>
      %30 = vector.broadcast %29 : vector<16x1xf32> to vector<16x128xf32>
      %31 = arith.subf %25, %30 : vector<16x128xf32>
      %32 = arith.mulf %31, %31 : vector<16x128xf32>
      %cst_22 = arith.constant dense<0.000000e+00> : vector<16xf32>
      %33 = vector.multi_reduction <add>, %32, %cst_22 [1] : vector<16x128xf32> to vector<16xf32>
      %34 = vector.shape_cast %33 : vector<16xf32> to vector<16x1xf32>
      %cst_23 = arith.constant 1.280000e+02 : f32
      %35 = vector.broadcast %cst_23 : f32 to vector<16x1xf32>
      %36 = arith.divf %34, %35 : vector<16x1xf32>
      %cst_24 = arith.constant 9.99999974E-6 : f32
      %37 = vector.broadcast %cst_24 : f32 to vector<16x1xf32>
      %38 = arith.addf %36, %37 : vector<16x1xf32>
      %39 = math.rsqrt %38 : vector<16x1xf32>
      %40 = vector.broadcast %39 : vector<16x1xf32> to vector<16x128xf32>
      %41 = arith.mulf %31, %40 : vector<16x128xf32>
      %c0_25 = arith.constant 0 : index
      %c0_26 = arith.constant 0 : index
      %42 = vector.load %arg7[%c0_25, %c0_26] : memref<1x128xf32, #tpu.memory_space<vmem>>, vector<1x128xf32>
      %43 = vector.broadcast %42 : vector<1x128xf32> to vector<16x128xf32>
      %44 = arith.mulf %41, %43 : vector<16x128xf32>
      %c0_27 = arith.constant 0 : index
      %c0_28 = arith.constant 0 : index
      %45 = vector.load %arg8[%c0_27, %c0_28] : memref<1x128xf32, #tpu.memory_space<vmem>>, vector<1x128xf32>
      %46 = vector.broadcast %45 : vector<1x128xf32> to vector<16x128xf32>
      %47 = arith.addf %44, %46 : vector<16x128xf32>
      %c0_29 = arith.constant 0 : index
      %c0_30 = arith.constant 0 : index
      %48 = vector.load %arg9[%c0_29, %c0_30] : memref<16x128xf32, #tpu.memory_space<vmem>>, vector<16x128xf32>
      tpu.vector_store %arg9[%c0_29, %c0_30], %47 {strides = array<i32>} : memref<16x128xf32, #tpu.memory_space<vmem>>, vector<16x128xf32>,
    } else {
    }
    return
  }
  func.func @transform_0(%arg0: i32, %arg1: i32) -> (i32, i32) {
    %c0_i32 = arith.constant 0 : i32
    %c0_i32_0 = arith.constant 0 : i32
    return %arg0, %c0_i32 : i32, i32
  }
  func.func @transform_1(%arg0: i32, %arg1: i32) -> (i32, i32) {
    %c0_i32 = arith.constant 0 : i32
    %c0_i32_0 = arith.constant 0 : i32
    return %c0_i32, %arg1 : i32, i32
  }
  func.func @transform_2(%arg0: i32, %arg1: i32) -> (i32, i32) {
    %c0_i32 = arith.constant 0 : i32
    %c0_i32_0 = arith.constant 0 : i32
    return %c0_i32, %arg1 : i32, i32
  }
  func.func @transform_3(%arg0: i32, %arg1: i32) -> (i32, i32) {
    %c0_i32 = arith.constant 0 : i32
    %c0_i32_0 = arith.constant 0 : i32
    return %arg1, %c0_i32 : i32, i32
  }
  func.func @transform_4(%arg0: i32, %arg1: i32) -> (i32, i32) {
    %c0_i32 = arith.constant 0 : i32
    %c0_i32_0 = arith.constant 0 : i32
    %c0_i32_1 = arith.constant 0 : i32
    return %c0_i32, %c0_i32_0 : i32, i32
  }
  func.func @transform_5(%arg0: i32, %arg1: i32) -> (i32, i32) {
    %c0_i32 = arith.constant 0 : i32
    %c0_i32_0 = arith.constant 0 : i32
    %c0_i32_1 = arith.constant 0 : i32
    return %c0_i32, %c0_i32_0 : i32, i32
  }
  func.func @transform_6(%arg0: i32, %arg1: i32) -> (i32, i32) {
    %c0_i32 = arith.constant 0 : i32
    %c0_i32_0 = arith.constant 0 : i32
    %c0_i32_1 = arith.constant 0 : i32
    return %c0_i32, %c0_i32_0 : i32, i32
  }
  func.func @transform_7(%arg0: i32, %arg1: i32) -> (i32, i32) {
    %c0_i32 = arith.constant 0 : i32
    %c0_i32_0 = arith.constant 0 : i32
    return %arg0, %c0_i32 : i32, i32
  }
}

</mosaic_0001>

<llo_original>
// kernel: tpu_custom_call.1
$region0: #{tpu_custom_call.1}
  #allocation0 [shape = 'u32[]', space=smem, size = 0x4, offset = 0x4, fixed_abs, tag = 'smem constant byte address 0x4 - core index']
  #allocation1 [shape = 'u32[144,128]{1,0:T(1,128)}', space=vmem, size = 0x12000, scoped, tag = 'internal scratch']
  #allocation2 [shape = 'f32[16,128]{1,0:T(8,128)}', space=vmem, size = 0x2000, scoped, tag = 'scratch operand']
  %s0 = inlined_call_operand.hbm [shape: f32[16,128], index: 0, kind: input, shape index: {}]
  %s1 = inlined_call_operand.hbm [shape: bf16[128,512], index: 1, kind: input, shape index: {}]
  %s2 = inlined_call_operand.vmem [shape: f32[1,512], index: 2, kind: input, shape index: {}]
  %s3 = inlined_call_operand.hbm [shape: bf16[512,128], index: 3, kind: input, shape index: {}]
  %s4 = inlined_call_operand.vmem [shape: f32[1,128], index: 4, kind: input, shape index: {}]
  %s5 = inlined_call_operand.vmem [shape: f32[1,128], index: 5, kind: input, shape index: {}]
  %s6 = inlined_call_operand.vmem [shape: f32[1,128], index: 6, kind: input, shape index: {}]
  %s7 = inlined_call_operand.hbm [shape: f32[16,128], index: 7, kind: output, shape index: {}]
  %s8 = sld [smem:[#allocation0]]
  $region58: #{tpu_custom_call.1} parent=0
    _
  %s10 = ssub.s32 1, %s8
  %s11 = scalar_select 0, %s10, %s8
  $region1: #{tpu_custom_call.1} parent=0
    #allocation3 [shape = 'u8[8192]{0}', space=vmem, size = 0x2000, scoped, tag = 'input window, operand 0, single buffered']
    #allocation4 [shape = 's32[1]{0}', space=sflag, size = 0x4, scoped, tag = 'scoped memory for tpu_custom_call.1']
    #allocation5 [shape = 's32[1]{0}', space=sflag, size = 0x4, scoped, tag = 'scoped memory for tpu_custom_call.1']
    #allocation6 [shape = 'u8[131072]{0}', space=vmem, size = 0x20000, scoped, tag = 'input window, operand 1, single buffered']
    #allocation7 [shape = 's32[1]{0}', space=sflag, size = 0x4, scoped, tag = 'scoped memory for tpu_custom_call.1']
    #allocation8 [shape = 'u8[131072]{0}', space=vmem, size = 0x20000, scoped, tag = 'input window, operand 3, single buffered']
    #allocation9 [shape = 'u8[8192]{0}', space=vmem, size = 0x2000, scoped, tag = 'output window, operand 0, single buffered']
    %12 = vsyncpa [#allocation4], 0
    %13 = vsyncpa [#allocation7], 0
    %14 = vsyncpa [#allocation5], 0
    // Predicated region
    $region2: #{tpu_custom_call.1} parent=1 // pred_check
      _
    $region3: #{tpu_custom_call.1} parent=1 // pred_check_branch
      %16 = sbr.rel (0) target = $region5
    $region4: #{tpu_custom_call.1} parent=1 // pred_region
      %s18 = ssub.s32 256, 256
      %19 = vsyncadd [#allocation4], %s18
      %s20 = sshll.u32 [#allocation3], 4
      %s21 = int_to_ptr.vmem [resolvable:$true] %s20
      %26 = dma.hbm_to_vmem [thread:$0]  %s0, 256, %s21, [#allocation4], 128, 128, 8
    $region5: #{tpu_custom_call.1} parent=1 // pred_fallthru
      _
    // Predicated region
    $region6: #{tpu_custom_call.1} parent=1 // pred_check
      _
    $region7: #{tpu_custom_call.1} parent=1 // pred_check_branch
      %28 = sbr.rel (0) target = $region9
    $region8: #{tpu_custom_call.1} parent=1 // pred_region
      %s30 = ssub.s32 4096, 4096
      %31 = vsyncadd [#allocation7], %s30
      %s32 = sshll.u32 [#allocation6], 4
      %s33 = int_to_ptr.vmem [resolvable:$true] %s32
      %38 = dma.hbm_to_vmem [thread:$0]  %s1, 4096, %s33, [#allocation7], 256, 256, 16
    $region9: #{tpu_custom_call.1} parent=1 // pred_fallthru
      _
    // Predicated region
    $region10: #{tpu_custom_call.1} parent=1 // pred_check
      _
    $region11: #{tpu_custom_call.1} parent=1 // pred_check_branch
      %40 = sbr.rel (0) target = $region13
    $region12: #{tpu_custom_call.1} parent=1 // pred_region
      _
    $region13: #{tpu_custom_call.1} parent=1 // pred_fallthru
      _
    // Predicated region
    $region14: #{tpu_custom_call.1} parent=1 // pred_check
      _
    $region15: #{tpu_custom_call.1} parent=1 // pred_check_branch
      %42 = sbr.rel (0) target = $region17
    $region16: #{tpu_custom_call.1} parent=1 // pred_region
      %s44 = ssub.s32 4096, 4096
      %45 = vsyncadd [#allocation7], %s44
      %s46 = sshll.u32 [#allocation8], 4
      %s47 = int_to_ptr.vmem [resolvable:$true] %s46
      %52 = dma.hbm_to_vmem [thread:$0]  %s3, 4096, %s47, [#allocation7], 64, 64, 4
    $region17: #{tpu_custom_call.1} parent=1 // pred_fallthru
      _
    // Predicated region
    $region18: #{tpu_custom_call.1} parent=1 // pred_check
      _
    $region19: #{tpu_custom_call.1} parent=1 // pred_check_branch
      %54 = sbr.rel (0) target = $region21
    $region20: #{tpu_custom_call.1} parent=1 // pred_region
      _
    $region21: #{tpu_custom_call.1} parent=1 // pred_fallthru
      _
    // Predicated region
    $region22: #{tpu_custom_call.1} parent=1 // pred_check
      _
    $region23: #{tpu_custom_call.1} parent=1 // pred_check_branch
      %56 = sbr.rel (0) target = $region25
    $region24: #{tpu_custom_call.1} parent=1 // pred_region
      _
    $region25: #{tpu_custom_call.1} parent=1 // pred_fallthru
      _
    // Predicated region
    $region26: #{tpu_custom_call.1} parent=1 // pred_check
      _
    $region27: #{tpu_custom_call.1} parent=1 // pred_check_branch
      %58 = sbr.rel (0) target = $region29
    $region28: #{tpu_custom_call.1} parent=1 // pred_region
      _
    $region29: #{tpu_custom_call.1} parent=1 // pred_fallthru
      _
    // Predicated region
    $region30: #{tpu_custom_call.1} parent=1 // pred_check
      _
    $region31: #{tpu_custom_call.1} parent=1 // pred_check_branch
      %60 = sbr.rel (0) target = $region33
    $region32: #{tpu_custom_call.1} parent=1 // pred_region
      %61 = dma.done [#allocation4], 256
    $region33: #{tpu_custom_call.1} parent=1 // pred_fallthru
      _
    // Predicated region
    $region34: #{tpu_custom_call.1} parent=1 // pred_check
      _
    $region35: #{tpu_custom_call.1} parent=1 // pred_check_branch
      %63 = sbr.rel (0) target = $region37
    $region36: #{tpu_custom_call.1} parent=1 // pred_region
      %64 = dma.done [#allocation7], 4096
    $region37: #{tpu_custom_call.1} parent=1 // pred_fallthru
      _
    // Predicated region
    $region38: #{tpu_custom_call.1} parent=1 // pred_check
      _
    $region39: #{tpu_custom_call.1} parent=1 // pred_check_branch
      %66 = sbr.rel (0) target = $region41
    $region40: #{tpu_custom_call.1} parent=1 // pred_region
      %67 = dma.done [#allocation7], 4096
    $region41: #{tpu_custom_call.1} parent=1 // pred_fallthru
      _
    %p69 = scmp.eq.s32.totalorder 0, 0
    // Predicated region
    $region42: #{tpu_custom_call.1} parent=1 // pred_check
      %p70 = pneg %p69
    $region43: #{tpu_custom_call.1} parent=1 // pred_check_branch
      %72 = sbr.rel (%p70) target = $region45
    $region44: #{tpu_custom_call.1} parent=1 // pred_region
      %73 = vst [vmem:[#allocation2] sm:$0xff] 0.0
      %74 = vst [vmem:[#allocation2 + $0x8] sm:$0xff] 0.0
    $region45: #{tpu_custom_call.1} parent=1 // pred_fallthru
      _
    %v75 = vld [vmem:[#allocation3] sm:$0xff]
    %v76 = vld [vmem:[#allocation3 + $0x8] sm:$0xff]
    %v77 = vpack.c.bf16 %v76, %v75
    %v78 = vld [vmem:[#allocation6] sm:$0xff]
    %v79 = vld [vmem:[#allocation6 + $0x8] sm:$0xff]
    %v80 = vld [vmem:[#allocation6 + $0x10] sm:$0xff]
    %v81 = vld [vmem:[#allocation6 + $0x18] sm:$0xff]
    %v82 = vld [vmem:[#allocation6 + $0x20] sm:$0xff]
    %v83 = vld [vmem:[#allocation6 + $0x28] sm:$0xff]
    %v84 = vld [vmem:[#allocation6 + $0x30] sm:$0xff]
    %v85 = vld [vmem:[#allocation6 + $0x38] sm:$0xff]
    %v86 = vld [vmem:[#allocation6 + $0x40] sm:$0xff]
    %v87 = vld [vmem:[#allocation6 + $0x48] sm:$0xff]
    %v88 = vld [vmem:[#allocation6 + $0x50] sm:$0xff]
    %v89 = vld [vmem:[#allocation6 + $0x58] sm:$0xff]
    %v90 = vld [vmem:[#allocation6 + $0x60] sm:$0xff]
    %v91 = vld [vmem:[#allocation6 + $0x68] sm:$0xff]
    %v92 = vld [vmem:[#allocation6 + $0x70] sm:$0xff]
    %v93 = vld [vmem:[#allocation6 + $0x78] sm:$0xff]
    %v94 = vld [vmem:[#allocation6 + $0x80] sm:$0xff]
    %v95 = vld [vmem:[#allocation6 + $0x88] sm:$0xff]
    %v96 = vld [vmem:[#allocation6 + $0x90] sm:$0xff]
    %v97 = vld [vmem:[#allocation6 + $0x98] sm:$0xff]
    %v98 = vld [vmem:[#allocation6 + $0xa0] sm:$0xff]
    %v99 = vld [vmem:[#allocation6 + $0xa8] sm:$0xff]
    %v100 = vld [vmem:[#allocation6 + $0xb0] sm:$0xff]
    %v101 = vld [vmem:[#allocation6 + $0xb8] sm:$0xff]
    %v102 = vld [vmem:[#allocation6 + $0xc0] sm:$0xff]
    %v103 = vld [vmem:[#allocation6 + $0xc8] sm:$0xff]
    %v104 = vld [vmem:[#allocation6 + $0xd0] sm:$0xff]
    %v105 = vld [vmem:[#allocation6 + $0xd8] sm:$0xff]
    %v106 = vld [vmem:[#allocation6 + $0xe0] sm:$0xff]
    %v107 = vld [vmem:[#allocation6 + $0xe8] sm:$0xff]
    %v108 = vld [vmem:[#allocation6 + $0xf0] sm:$0xff]
    %v109 = vld [vmem:[#allocation6 + $0xf8] sm:$0xff]
    %v110 = vld [vmem:[%s2] sm:$0xf]
    %v112 = vlaneseq
    %v113 = vshrl.u32 %v112, 7
    %v114 = vsub.s32 0, %v113
    %v115 = vrot.slane %v110, %v114
    %v116 = vlaneseq
    %v117 = vshrl.u32 %v116, 7
    %v118 = vsub.s32 1, %v117
    %v119 = vrot.slane %v110, %v118
    %v120 = vlaneseq
    %v121 = vshrl.u32 %v120, 7
    %v122 = vsub.s32 2, %v121
    %v123 = vrot.slane %v110, %v122
    %v124 = vlaneseq
    %v125 = vshrl.u32 %v124, 7
    %v126 = vsub.s32 3, %v125
    %v127 = vrot.slane %v110, %v126
    %v164 = vunpack.c.l.b16 %v78
    %v165 = vunpack.c.h.b16 %v78
    %v166 = vunpack.c.l.b16 %v79
    %v167 = vunpack.c.h.b16 %v79
    %v168 = vunpack.c.l.b16 %v80
    %v169 = vunpack.c.h.b16 %v80
    %v170 = vunpack.c.l.b16 %v81
    %v171 = vunpack.c.h.b16 %v81
    %v172 = vunpack.c.l.b16 %v82
    %v173 = vunpack.c.h.b16 %v82
    %v174 = vunpack.c.l.b16 %v83
    %v175 = vunpack.c.h.b16 %v83
    %v176 = vunpack.c.l.b16 %v84
    %v177 = vunpack.c.h.b16 %v84
    %v178 = vunpack.c.l.b16 %v85
    %v179 = vunpack.c.h.b16 %v85
    %v180 = vunpack.c.l.b16 %v86
    %v181 = vunpack.c.h.b16 %v86
    %v182 = vunpack.c.l.b16 %v87
    %v183 = vunpack.c.h.b16 %v87
    %v184 = vunpack.c.l.b16 %v88
    %v185 = vunpack.c.h.b16 %v88
    %v186 = vunpack.c.l.b16 %v89
    %v187 = vunpack.c.h.b16 %v89
    %v188 = vunpack.c.l.b16 %v90
    %v189 = vunpack.c.h.b16 %v90
    %v190 = vunpack.c.l.b16 %v91
    %v191 = vunpack.c.h.b16 %v91
    %v192 = vunpack.c.l.b16 %v92
    %v193 = vunpack.c.h.b16 %v92
    %v194 = vunpack.c.l.b16 %v93
    %v195 = vunpack.c.h.b16 %v93
    %v196 = vunpack.c.l.b16 %v94
    %v197 = vunpack.c.h.b16 %v94
    %v198 = vunpack.c.l.b16 %v95
    %v199 = vunpack.c.h.b16 %v95
    %v200 = vunpack.c.l.b16 %v96
    %v201 = vunpack.c.h.b16 %v96
    %v202 = vunpack.c.l.b16 %v97
    %v203 = vunpack.c.h.b16 %v97
    %v204 = vunpack.c.l.b16 %v98
    %v205 = vunpack.c.h.b16 %v98
    %v206 = vunpack.c.l.b16 %v99
    %v207 = vunpack.c.h.b16 %v99
    %v208 = vunpack.c.l.b16 %v100
    %v209 = vunpack.c.h.b16 %v100
    %v210 = vunpack.c.l.b16 %v101
    %v211 = vunpack.c.h.b16 %v101
    %v212 = vunpack.c.l.b16 %v102
    %v213 = vunpack.c.h.b16 %v102
    %v214 = vunpack.c.l.b16 %v103
    %v215 = vunpack.c.h.b16 %v103
    %v216 = vunpack.c.l.b16 %v104
    %v217 = vunpack.c.h.b16 %v104
    %v218 = vunpack.c.l.b16 %v105
    %v219 = vunpack.c.h.b16 %v105
    %v220 = vunpack.c.l.b16 %v106
    %v221 = vunpack.c.h.b16 %v106
    %v222 = vunpack.c.l.b16 %v107
    %v223 = vunpack.c.h.b16 %v107
    %v224 = vunpack.c.l.b16 %v108
    %v225 = vunpack.c.h.b16 %v108
    %v226 = vunpack.c.l.b16 %v109
    %v227 = vunpack.c.h.b16 %v109
    %v228 = vpack.c.b16 %v168, %v164
    %v229 = vpack.c.b16 %v169, %v165
    %v230 = vpack.c.b16 %v170, %v166
    %v231 = vpack.c.b16 %v171, %v167
    %v232 = vpack.c.b16 %v176, %v172
    %v233 = vpack.c.b16 %v177, %v173
    %v234 = vpack.c.b16 %v178, %v174
    %v235 = vpack.c.b16 %v179, %v175
    %v236 = vpack.c.b16 %v184, %v180
    %v237 = vpack.c.b16 %v185, %v181
    %v238 = vpack.c.b16 %v186, %v182
    %v239 = vpack.c.b16 %v187, %v183
    %v240 = vpack.c.b16 %v192, %v188
    %v241 = vpack.c.b16 %v193, %v189
    %v242 = vpack.c.b16 %v194, %v190
    %v243 = vpack.c.b16 %v195, %v191
    %v244 = vpack.c.b16 %v200, %v196
    %v245 = vpack.c.b16 %v201, %v197
    %v246 = vpack.c.b16 %v202, %v198
    %v247 = vpack.c.b16 %v203, %v199
    %v248 = vpack.c.b16 %v208, %v204
    %v249 = vpack.c.b16 %v209, %v205
    %v250 = vpack.c.b16 %v210, %v206
    %v251 = vpack.c.b16 %v211, %v207
    %v252 = vpack.c.b16 %v216, %v212
    %v253 = vpack.c.b16 %v217, %v213
    %v254 = vpack.c.b16 %v218, %v214
    %v255 = vpack.c.b16 %v219, %v215
    %v256 = vpack.c.b16 %v224, %v220
    %v257 = vpack.c.b16 %v225, %v221
    %v258 = vpack.c.b16 %v226, %v222
    %v259 = vpack.c.b16 %v227, %v223
    %292 = vmatprep.subr.bf16.mxu0 %v229
    %293 = vmatpush1.bf16.msra.mxu0 %v228
    %294 = vmatprep.subr.bf16.mxu0 %v233
    %295 = vmatpush1.bf16.msra.mxu0 %v232
    %296 = vmatprep.subr.bf16.mxu0 %v237
    %297 = vmatpush1.bf16.msra.mxu0 %v236
    %298 = vmatprep.subr.bf16.mxu0 %v241
    %299 = vmatpush1.bf16.msra.mxu0 %v240
    %300 = vmatprep.subr.bf16.mxu0 %v245
    %301 = vmatpush1.bf16.msra.mxu0 %v244
    %302 = vmatprep.subr.bf16.mxu0 %v249
    %303 = vmatpush1.bf16.msra.mxu0 %v248
    %304 = vmatprep.subr.bf16.mxu0 %v253
    %305 = vmatpush1.bf16.msra.mxu0 %v252
    %306 = vmatprep.subr.bf16.mxu0 %v257
    %307 = vmatpush1.bf16.msra.mxu0 %v256
    %308 = vmatprep.subr.bf16.mxu0 0
    %309 = vmatpush1.bf16.msra.mxu0 0
    %310 = vmatprep.subr.bf16.mxu0 0
    %311 = vmatpush1.bf16.msra.mxu0 0
    %312 = vmatprep.subr.bf16.mxu0 0
    %313 = vmatpush1.bf16.msra.mxu0 0
    %314 = vmatprep.subr.bf16.mxu0 0
    %315 = vmatpush1.bf16.msra.mxu0 0
    %316 = vmatprep.subr.bf16.mxu0 0
    %317 = vmatpush1.bf16.msra.mxu0 0
    %318 = vmatprep.subr.bf16.mxu0 0
    %319 = vmatpush1.bf16.msra.mxu0 0
    %320 = vmatprep.subr.bf16.mxu0 0
    %321 = vmatpush1.bf16.msra.mxu0 0
    %322 = vmatprep.subr.bf16.mxu0 0
    %323 = vmatpush1.bf16.msra.mxu0 0
    %324 = vmatprep.mubr.bf16.mxu0 0
    %325 = vmatmul.mubr.bf16.gmra.mrb[0].mxu0 %v77
    %v326 = vpop.f32.mrb[0].mxu0
    %v327 = vadd.f32 %v115, %v326
    %v328 = vpop.f32.mrb[0].mxu0
    %v329 = vadd.f32 %v119, %v328
    %v330 = vpop.f32.mrb[0].mxu0
    %v331 = vadd.f32 %v115, %v330
    %v332 = vpop.f32.mrb[0].mxu0
    %v333 = vadd.f32 %v119, %v332
    %334 = vdwg.mxu0
    %335 = vmatprep.subr.bf16.mxu0 %v231
    %336 = vmatpush1.bf16.msra.mxu0 %v230
    %337 = vmatprep.subr.bf16.mxu0 %v235
    %338 = vmatpush1.bf16.msra.mxu0 %v234
    %339 = vmatprep.subr.bf16.mxu0 %v239
    %340 = vmatpush1.bf16.msra.mxu0 %v238
    %341 = vmatprep.subr.bf16.mxu0 %v243
    %342 = vmatpush1.bf16.msra.mxu0 %v242
    %343 = vmatprep.subr.bf16.mxu0 %v247
    %344 = vmatpush1.bf16.msra.mxu0 %v246
    %345 = vmatprep.subr.bf16.mxu0 %v251
    %346 = vmatpush1.bf16.msra.mxu0 %v250
    %347 = vmatprep.subr.bf16.mxu0 %v255
    %348 = vmatpush1.bf16.msra.mxu0 %v254
    %349 = vmatprep.subr.bf16.mxu0 %v259
    %350 = vmatpush1.bf16.msra.mxu0 %v258
    %351 = vmatprep.subr.bf16.mxu0 0
    %352 = vmatpush1.bf16.msra.mxu0 0
    %353 = vmatprep.subr.bf16.mxu0 0
    %354 = vmatpush1.bf16.msra.mxu0 0
    %355 = vmatprep.subr.bf16.mxu0 0
    %356 = vmatpush1.bf16.msra.mxu0 0
    %357 = vmatprep.subr.bf16.mxu0 0
    %358 = vmatpush1.bf16.msra.mxu0 0
    %359 = vmatprep.subr.bf16.mxu0 0
    %360 = vmatpush1.bf16.msra.mxu0 0
    %361 = vmatprep.subr.bf16.mxu0 0
    %362 = vmatpush1.bf16.msra.mxu0 0
    %363 = vmatprep.subr.bf16.mxu0 0
    %364 = vmatpush1.bf16.msra.mxu0 0
    %365 = vmatprep.subr.bf16.mxu0 0
    %366 = vmatpush1.bf16.msra.mxu0 0
    %367 = vmatprep.mubr.bf16.mxu0 0
    %368 = vmatmul.mubr.bf16.gmra.mrb[0].mxu0 %v77
    %v369 = vpop.f32.mrb[0].mxu0
    %v370 = vadd.f32 %v123, %v369
    %v371 = vpop.f32.mrb[0].mxu0
    %v372 = vadd.f32 %v127, %v371
    %v373 = vpop.f32.mrb[0].mxu0
    %v374 = vadd.f32 %v123, %v373
    %v375 = vpop.f32.mrb[0].mxu0
    %v376 = vadd.f32 %v127, %v375
    %377 = vdwg.mxu0
    %v378 = vmax.f32 %v327, 0.0
    %v379 = vmax.f32 %v329, 0.0
    %v380 = vmax.f32 %v370, 0.0
    %v381 = vmax.f32 %v372, 0.0
    %v382 = vmax.f32 %v331, 0.0
    %v383 = vmax.f32 %v333, 0.0
    %v384 = vmax.f32 %v374, 0.0
    %v385 = vmax.f32 %v376, 0.0
    %v386 = vld [vmem:[#allocation2] sm:$0xff]
    %v387 = vld [vmem:[#allocation2 + $0x8] sm:$0xff]
    %v388 = vpack.c.bf16 %v382, %v378
    %v389 = vpack.c.bf16 %v383, %v379
    %v390 = vpack.c.bf16 %v384, %v380
    %v391 = vpack.c.bf16 %v385, %v381
    %v392 = vld [vmem:[#allocation8] sm:$0xf]
    %v393 = vld [vmem:[#allocation8 + $0x4] sm:$0xf]
    %v394 = vld [vmem:[#allocation8 + $0x8] sm:$0xf]
    %v395 = vld [vmem:[#allocation8 + $0xc] sm:$0xf]
    %v396 = vld [vmem:[#allocation8 + $0x10] sm:$0xf]
    %v397 = vld [vmem:[#allocation8 + $0x14] sm:$0xf]
    %v398 = vld [vmem:[#allocation8 + $0x18] sm:$0xf]
    %v399 = vld [vmem:[#allocation8 + $0x1c] sm:$0xf]
    %v400 = vld [vmem:[#allocation8 + $0x20] sm:$0xf]
    %v401 = vld [vmem:[#allocation8 + $0x24] sm:$0xf]
    %v402 = vld [vmem:[#allocation8 + $0x28] sm:$0xf]
    %v403 = vld [vmem:[#allocation8 + $0x2c] sm:$0xf]
    %v404 = vld [vmem:[#allocation8 + $0x30] sm:$0xf]
    %v405 = vld [vmem:[#allocation8 + $0x34] sm:$0xf]
    %v406 = vld [vmem:[#allocation8 + $0x38] sm:$0xf]
    %v407 = vld [vmem:[#allocation8 + $0x3c] sm:$0xf]
    %v408 = vld [vmem:[#allocation8 + $0x40] sm:$0xf]
    %v409 = vld [vmem:[#allocation8 + $0x44] sm:$0xf]
    %v410 = vld [vmem:[#allocation8 + $0x48] sm:$0xf]
    %v411 = vld [vmem:[#allocation8 + $0x4c] sm:$0xf]
    %v412 = vld [vmem:[#allocation8 + $0x50] sm:$0xf]
    %v413 = vld [vmem:[#allocation8 + $0x54] sm:$0xf]
    %v414 = vld [vmem:[#allocation8 + $0x58] sm:$0xf]
    %v415 = vld [vmem:[#allocation8 + $0x5c] sm:$0xf]
    %v416 = vld [vmem:[#allocation8 + $0x60] sm:$0xf]
    %v417 = vld [vmem:[#allocation8 + $0x64] sm:$0xf]
    %v418 = vld [vmem:[#allocation8 + $0x68] sm:$0xf]
    %v419 = vld [vmem:[#allocation8 + $0x6c] sm:$0xf]
    %v420 = vld [vmem:[#allocation8 + $0x70] sm:$0xf]
    %v421 = vld [vmem:[#allocation8 + $0x74] sm:$0xf]
    %v422 = vld [vmem:[#allocation8 + $0x78] sm:$0xf]
    %v423 = vld [vmem:[#allocation8 + $0x7c] sm:$0xf]
    %v424 = vld [vmem:[#allocation8 + $0x80] sm:$0xf]
    %v425 = vld [vmem:[#allocation8 + $0x84] sm:$0xf]
    %v426 = vld [vmem:[#allocation8 + $0x88] sm:$0xf]
    %v427 = vld [vmem:[#allocation8 + $0x8c] sm:$0xf]
    %v428 = vld [vmem:[#allocation8 + $0x90] sm:$0xf]
    %v429 = vld [vmem:[#allocation8 + $0x94] sm:$0xf]
    %v430 = vld [vmem:[#allocation8 + $0x98] sm:$0xf]
    %v431 = vld [vmem:[#allocation8 + $0x9c] sm:$0xf]
    %v432 = vld [vmem:[#allocation8 + $0xa0] sm:$0xf]
    %v433 = vld [vmem:[#allocation8 + $0xa4] sm:$0xf]
    %v434 = vld [vmem:[#allocation8 + $0xa8] sm:$0xf]
    %v435 = vld [vmem:[#allocation8 + $0xac] sm:$0xf]
    %v436 = vld [vmem:[#allocation8 + $0xb0] sm:$0xf]
    %v437 = vld [vmem:[#allocation8 + $0xb4] sm:$0xf]
    %v438 = vld [vmem:[#allocation8 + $0xb8] sm:$0xf]
    %v439 = vld [vmem:[#allocation8 + $0xbc] sm:$0xf]
    %v440 = vld [vmem:[#allocation8 + $0xc0] sm:$0xf]
    %v441 = vld [vmem:[#allocation8 + $0xc4] sm:$0xf]
    %v442 = vld [vmem:[#allocation8 + $0xc8] sm:$0xf]
    %v443 = vld [vmem:[#allocation8 + $0xcc] sm:$0xf]
    %v444 = vld [vmem:[#allocation8 + $0xd0] sm:$0xf]
    %v445 = vld [vmem:[#allocation8 + $0xd4] sm:$0xf]
    %v446 = vld [vmem:[#allocation8 + $0xd8] sm:$0xf]
    %v447 = vld [vmem:[#allocation8 + $0xdc] sm:$0xf]
    %v448 = vld [vmem:[#allocation8 + $0xe0] sm:$0xf]
    %v449 = vld [vmem:[#allocation8 + $0xe4] sm:$0xf]
    %v450 = vld [vmem:[#allocation8 + $0xe8] sm:$0xf]
    %v451 = vld [vmem:[#allocation8 + $0xec] sm:$0xf]
    %v452 = vld [vmem:[#allocation8 + $0xf0] sm:$0xf]
    %v453 = vld [vmem:[#allocation8 + $0xf4] sm:$0xf]
    %v454 = vld [vmem:[#allocation8 + $0xf8] sm:$0xf]
    %v455 = vld [vmem:[#allocation8 + $0xfc] sm:$0xf]
    %v520 = vunpack.c.l.b16 %v392
    %v521 = vunpack.c.l.b16 %v393
    %v522 = vunpack.c.l.b16 %v394
    %v523 = vunpack.c.l.b16 %v395
    %v524 = vunpack.c.l.b16 %v396
    %v525 = vunpack.c.l.b16 %v397
    %v526 = vunpack.c.l.b16 %v398
    %v527 = vunpack.c.l.b16 %v399
    %v528 = vunpack.c.l.b16 %v400
    %v529 = vunpack.c.l.b16 %v401
    %v530 = vunpack.c.l.b16 %v402
    %v531 = vunpack.c.l.b16 %v403
    %v532 = vunpack.c.l.b16 %v404
    %v533 = vunpack.c.l.b16 %v405
    %v534 = vunpack.c.l.b16 %v406
    %v535 = vunpack.c.l.b16 %v407
    %v536 = vunpack.c.l.b16 %v408
    %v537 = vunpack.c.l.b16 %v409
    %v538 = vunpack.c.l.b16 %v410
    %v539 = vunpack.c.l.b16 %v411
    %v540 = vunpack.c.l.b16 %v412
    %v541 = vunpack.c.l.b16 %v413
    %v542 = vunpack.c.l.b16 %v414
    %v543 = vunpack.c.l.b16 %v415
    %v544 = vunpack.c.l.b16 %v416
    %v545 = vunpack.c.l.b16 %v417
    %v546 = vunpack.c.l.b16 %v418
    %v547 = vunpack.c.l.b16 %v419
    %v548 = vunpack.c.l.b16 %v420
    %v549 = vunpack.c.l.b16 %v421
    %v550 = vunpack.c.l.b16 %v422
    %v551 = vunpack.c.l.b16 %v423
    %v552 = vunpack.c.l.b16 %v424
    %v553 = vunpack.c.l.b16 %v425
    %v554 = vunpack.c.l.b16 %v426
    %v555 = vunpack.c.l.b16 %v427
    %v556 = vunpack.c.l.b16 %v428
    %v557 = vunpack.c.l.b16 %v429
    %v558 = vunpack.c.l.b16 %v430
    %v559 = vunpack.c.l.b16 %v431
    %v560 = vunpack.c.l.b16 %v432
    %v561 = vunpack.c.l.b16 %v433
    %v562 = vunpack.c.l.b16 %v434
    %v563 = vunpack.c.l.b16 %v435
    %v564 = vunpack.c.l.b16 %v436
    %v565 = vunpack.c.l.b16 %v437
    %v566 = vunpack.c.l.b16 %v438
    %v567 = vunpack.c.l.b16 %v439
    %v568 = vunpack.c.l.b16 %v440
    %v569 = vunpack.c.l.b16 %v441
    %v570 = vunpack.c.l.b16 %v442
    %v571 = vunpack.c.l.b16 %v443
    %v572 = vunpack.c.l.b16 %v444
    %v573 = vunpack.c.l.b16 %v445
    %v574 = vunpack.c.l.b16 %v446
    %v575 = vunpack.c.l.b16 %v447
    %v576 = vunpack.c.l.b16 %v448
    %v577 = vunpack.c.l.b16 %v449
    %v578 = vunpack.c.l.b16 %v450
    %v579 = vunpack.c.l.b16 %v451
    %v580 = vunpack.c.l.b16 %v452
    %v581 = vunpack.c.l.b16 %v453
    %v582 = vunpack.c.l.b16 %v454
    %v583 = vunpack.c.l.b16 %v455
    %v584 = vpack.c.b16 %v521, %v520
    %v585 = vpack.c.b16 %v523, %v522
    %v586 = vpack.c.b16 %v525, %v524
    %v587 = vpack.c.b16 %v527, %v526
    %v588 = vpack.c.b16 %v529, %v528
    %v589 = vpack.c.b16 %v531, %v530
    %v590 = vpack.c.b16 %v533, %v532
    %v591 = vpack.c.b16 %v535, %v534
    %v592 = vpack.c.b16 %v537, %v536
    %v593 = vpack.c.b16 %v539, %v538
    %v594 = vpack.c.b16 %v541, %v540
    %v595 = vpack.c.b16 %v543, %v542
    %v596 = vpack.c.b16 %v545, %v544
    %v597 = vpack.c.b16 %v547, %v546
    %v598 = vpack.c.b16 %v549, %v548
    %v599 = vpack.c.b16 %v551, %v550
    %v600 = vpack.c.b16 %v553, %v552
    %v601 = vpack.c.b16 %v555, %v554
    %v602 = vpack.c.b16 %v557, %v556
    %v603 = vpack.c.b16 %v559, %v558
    %v604 = vpack.c.b16 %v561, %v560
    %v605 = vpack.c.b16 %v563, %v562
    %v606 = vpack.c.b16 %v565, %v564
    %v607 = vpack.c.b16 %v567, %v566
    %v608 = vpack.c.b16 %v569, %v568
    %v609 = vpack.c.b16 %v571, %v570
    %v610 = vpack.c.b16 %v573, %v572
    %v611 = vpack.c.b16 %v575, %v574
    %v612 = vpack.c.b16 %v577, %v576
    %v613 = vpack.c.b16 %v579, %v578
    %v614 = vpack.c.b16 %v581, %v580
    %v615 = vpack.c.b16 %v583, %v582
    %648 = vmatprep.subr.bf16.mxu0 0
    %649 = vmatpush1.bf16.msra.mxu0 %v584
    %650 = vmatprep.subr.bf16.mxu0 0
    %651 = vmatpush1.bf16.msra.mxu0 %v585
    %652 = vmatprep.subr.bf16.mxu0 0
    %653 = vmatpush1.bf16.msra.mxu0 %v586
    %654 = vmatprep.subr.bf16.mxu0 0
    %655 = vmatpush1.bf16.msra.mxu0 %v587
    %656 = vmatprep.subr.bf16.mxu0 0
    %657 = vmatpush1.bf16.msra.mxu0 %v588
    %658 = vmatprep.subr.bf16.mxu0 0
    %659 = vmatpush1.bf16.msra.mxu0 %v589
    %660 = vmatprep.subr.bf16.mxu0 0
    %661 = vmatpush1.bf16.msra.mxu0 %v590
    %662 = vmatprep.subr.bf16.mxu0 0
    %663 = vmatpush1.bf16.msra.mxu0 %v591
    %664 = vmatprep.subr.bf16.mxu0 0
    %665 = vmatpush1.bf16.msra.mxu0 %v592
    %666 = vmatprep.subr.bf16.mxu0 0
    %667 = vmatpush1.bf16.msra.mxu0 %v593
    %668 = vmatprep.subr.bf16.mxu0 0
    %669 = vmatpush1.bf16.msra.mxu0 %v594
    %670 = vmatprep.subr.bf16.mxu0 0
    %671 = vmatpush1.bf16.msra.mxu0 %v595
    %672 = vmatprep.subr.bf16.mxu0 0
    %673 = vmatpush1.bf16.msra.mxu0 %v596
    %674 = vmatprep.subr.bf16.mxu0 0
    %675 = vmatpush1.bf16.msra.mxu0 %v597
    %676 = vmatprep.subr.bf16.mxu0 0
    %677 = vmatpush1.bf16.msra.mxu0 %v598
    %678 = vmatprep.subr.bf16.mxu0 0
    %679 = vmatpush1.bf16.msra.mxu0 %v599
    %680 = vmatprep.mubr.bf16.mxu0 %v389
    %681 = vmatmul.mubr.bf16.gmra.mrb[0].mxu0 %v388
    %v682 = vpop.f32.mrb[0].mxu0
    %v683 = vadd.f32 0.0, %v682
    %v684 = vpop.f32.mrb[0].mxu0
    %v685 = vpop.f32.mrb[0].mxu0
    %v686 = vadd.f32 0.0, %v685
    %v687 = vpop.f32.mrb[0].mxu0
    %688 = vdwg.mxu0
    %689 = vmatprep.subr.bf16.mxu0 0
    %690 = vmatpush1.bf16.msra.mxu0 %v600
    %691 = vmatprep.subr.bf16.mxu0 0
    %692 = vmatpush1.bf16.msra.mxu0 %v601
    %693 = vmatprep.subr.bf16.mxu0 0
    %694 = vmatpush1.bf16.msra.mxu0 %v602
    %695 = vmatprep.subr.bf16.mxu0 0
    %696 = vmatpush1.bf16.msra.mxu0 %v603
    %697 = vmatprep.subr.bf16.mxu0 0
    %698 = vmatpush1.bf16.msra.mxu0 %v604
    %699 = vmatprep.subr.bf16.mxu0 0
    %700 = vmatpush1.bf16.msra.mxu0 %v605
    %701 = vmatprep.subr.bf16.mxu0 0
    %702 = vmatpush1.bf16.msra.mxu0 %v606
    %703 = vmatprep.subr.bf16.mxu0 0
    %704 = vmatpush1.bf16.msra.mxu0 %v607
    %705 = vmatprep.subr.bf16.mxu0 0
    %706 = vmatpush1.bf16.msra.mxu0 %v608
    %707 = vmatprep.subr.bf16.mxu0 0
    %708 = vmatpush1.bf16.msra.mxu0 %v609
    %709 = vmatprep.subr.bf16.mxu0 0
    %710 = vmatpush1.bf16.msra.mxu0 %v610
    %711 = vmatprep.subr.bf16.mxu0 0
    %712 = vmatpush1.bf16.msra.mxu0 %v611
    %713 = vmatprep.subr.bf16.mxu0 0
    %714 = vmatpush1.bf16.msra.mxu0 %v612
    %715 = vmatprep.subr.bf16.mxu0 0
    %716 = vmatpush1.bf16.msra.mxu0 %v613
    %717 = vmatprep.subr.bf16.mxu0 0
    %718 = vmatpush1.bf16.msra.mxu0 %v614
    %719 = vmatprep.subr.bf16.mxu0 0
    %720 = vmatpush1.bf16.msra.mxu0 %v615
    %721 = vmatprep.mubr.bf16.mxu0 %v391
    %722 = vmatmul.mubr.bf16.gmra.mrb[0].mxu0 %v390
    %v723 = vpop.f32.mrb[0].mxu0
    %v724 = vadd.f32 %v683, %v723
    %v725 = vpop.f32.mrb[0].mxu0
    %v726 = vpop.f32.mrb[0].mxu0
    %v727 = vadd.f32 %v686, %v726
    %v728 = vpop.f32.mrb[0].mxu0
    %729 = vdwg.mxu0
    %v730 = vadd.f32 %v386, %v724
    %v731 = vadd.f32 %v387, %v727
    %732 = vst [vmem:[#allocation2] sm:$0xff] %v730
    %733 = vst [vmem:[#allocation2 + $0x8] sm:$0xff] %v731
    // Predicated region
    $region46: #{tpu_custom_call.1} parent=1 // pred_check
      %p734 = pneg %p69
    $region47: #{tpu_custom_call.1} parent=1 // pred_check_branch
      %736 = sbr.rel (%p734) target = $region49
    $region48: #{tpu_custom_call.1} parent=1 // pred_region
      %v737 = vld [vmem:[#allocation2] sm:$0xff]
      %v738 = vld [vmem:[#allocation2 + $0x8] sm:$0xff]
      %v739 = vld [vmem:[%s4] sm:$0x1]
      %v741 = vlaneseq
      %v742 = vshrl.u32 %v741, 7
      %v743 = vsub.s32 0, %v742
      %v744 = vrot.slane %v739, %v743
      %v746 = vadd.f32 %v737, %v744
      %v747 = vadd.f32 %v738, %v744
      %v748 = vadd.f32 %v75, %v746
      %v749 = vadd.f32 %v76, %v747
      %750 = vadd.xlane.f32.xlu0 %v748
      %v751 = vpop.xlane.xlu0 %750
      %752 = vadd.xlane.f32.xlu0 %v749
      %v753 = vpop.xlane.xlu0 %752
      %v754 = vrcp.pop 128.0
      %v755 = vmul.f32 %v751, %v754
      %v756 = vmul.f32 %v753, %v754
      %v757 = vsub.f32 %v748, %v755
      %v758 = vsub.f32 %v749, %v756
      %v759 = vmul.f32 %v757, %v757
      %v760 = vmul.f32 %v758, %v758
      %761 = vadd.xlane.f32.xlu0 %v759
      %v762 = vpop.xlane.xlu0 %761
      %763 = vadd.xlane.f32.xlu0 %v760
      %v764 = vpop.xlane.xlu0 %763
      %v765 = vmul.f32 %v762, %v754
      %v766 = vmul.f32 %v764, %v754
      %v767 = vadd.f32 %v765, 1e-05
      %v768 = vadd.f32 %v766, 1e-05
      %v769 = vrsqrt.pop %v767
      %v770 = vrsqrt.pop %v768
      %v771 = vmul.f32 %v757, %v769
      %v772 = vmul.f32 %v758, %v770
      %v773 = vld [vmem:[%s5] sm:$0x1]
      %v775 = vlaneseq
      %v776 = vshrl.u32 %v775, 7
      %v777 = vsub.s32 0, %v776
      %v778 = vrot.slane %v773, %v777
      %v780 = vmul.f32 %v771, %v778
      %v781 = vmul.f32 %v772, %v778
      %v782 = vld [vmem:[%s6] sm:$0x1]
      %v784 = vlaneseq
      %v785 = vshrl.u32 %v784, 7
      %v786 = vsub.s32 0, %v785
      %v787 = vrot.slane %v782, %v786
      %v789 = vadd.f32 %v780, %v787
      %v790 = vadd.f32 %v781, %v787
      %791 = vst [vmem:[#allocation9] sm:$0xff] %v789
      %792 = vst [vmem:[#allocation9 + $0x8] sm:$0xff] %v790
    $region49: #{tpu_custom_call.1} parent=1 // pred_fallthru
      _
    // Predicated region
    $region50: #{tpu_custom_call.1} parent=1 // pred_check
      _
    $region51: #{tpu_custom_call.1} parent=1 // pred_check_branch
      %794 = sbr.rel (0) target = $region53
    $region52: #{tpu_custom_call.1} parent=1 // pred_region
      %s796 = ssub.s32 256, 256
      %797 = vsyncadd [#allocation5], %s796
      %s798 = sshll.u32 [#allocation9], 4
      %s799 = int_to_ptr.vmem [resolvable:$true] %s798
      %804 = dma.vmem_to_hbm [thread:$0]  %s799, 256, %s7, [#allocation5], 128, 128, 8
    $region53: #{tpu_custom_call.1} parent=1 // pred_fallthru
      _
    // Predicated region
    $region54: #{tpu_custom_call.1} parent=1 // pred_check
      _
    $region55: #{tpu_custom_call.1} parent=1 // pred_check_branch
      %806 = sbr.rel (0) target = $region57
    $region56: #{tpu_custom_call.1} parent=1 // pred_region
      %807 = dma.done [#allocation5], 256
    $region57: #{tpu_custom_call.1} parent=1 // pred_fallthru
      _
    %808 = vsyncpa [#allocation4], 1
    %809 = vsyncpa [#allocation7], 1
    %810 = vsyncpa [#allocation5], 1

// kernel: tpu_custom_call.1
$region0: #{tpu_custom_call.1}
  #allocation0 [shape = 'u32[]', space=smem, size = 0x4, offset = 0x4, fixed_abs, tag = 'smem constant byte address 0x4 - core index']
  #allocation1 [shape = 'u32[144,128]{1,0:T(1,128)}', space=vmem, size = 0x12000, scoped, tag = 'internal scratch']
  #allocation2 [shape = 'f32[16,128]{1,0:T(8,128)}', space=vmem, size = 0x2000, scoped, tag = 'scratch operand']
  %s0 = inlined_call_operand.hbm [shape: f32[16,128], index: 0, kind: input, shape index: {}]
  %s1 = inlined_call_operand.hbm [shape: bf16[128,512], index: 1, kind: input, shape index: {}]
  %s2 = inlined_call_operand.vmem [shape: f32[1,512], index: 2, kind: input, shape index: {}]
  %s3 = inlined_call_operand.hbm [shape: bf16[512,128], index: 3, kind: input, shape index: {}]
  %s4 = inlined_call_operand.vmem [shape: f32[1,128], index: 4, kind: input, shape index: {}]
  %s5 = inlined_call_operand.vmem [shape: f32[1,128], index: 5, kind: input, shape index: {}]
  %s6 = inlined_call_operand.vmem [shape: f32[1,128], index: 6, kind: input, shape index: {}]
  %s7 = inlined_call_operand.hbm [shape: f32[16,128], index: 7, kind: output, shape index: {}]
  %s8 = sld [smem:[#allocation0]]
  $region58: #{tpu_custom_call.1} parent=0
    _
  %s10 = ssub.s32 1, %s8
  %s11 = scalar_select 0, %s10, %s8
  $region1: #{tpu_custom_call.1} parent=0
    #allocation3 [shape = 'u8[8192]{0}', space=vmem, size = 0x2000, scoped, tag = 'input window, operand 0, single buffered']
    #allocation4 [shape = 's32[1]{0}', space=sflag, size = 0x4, scoped, tag = 'scoped memory for tpu_custom_call.1']
    #allocation5 [shape = 's32[1]{0}', space=sflag, size = 0x4, scoped, tag = 'scoped memory for tpu_custom_call.1']
    #allocation6 [shape = 'u8[131072]{0}', space=vmem, size = 0x20000, scoped, tag = 'input window, operand 1, single buffered']
    #allocation7 [shape = 's32[1]{0}', space=sflag, size = 0x4, scoped, tag = 'scoped memory for tpu_custom_call.1']
    #allocation8 [shape = 'u8[131072]{0}', space=vmem, size = 0x20000, scoped, tag = 'input window, operand 3, single buffered']
    #allocation9 [shape = 'u8[8192]{0}', space=vmem, size = 0x2000, scoped, tag = 'output window, operand 0, single buffered']
    %12 = vsyncpa [#allocation4], 0
    %13 = vsyncpa [#allocation7], 0
    %14 = vsyncpa [#allocation5], 0
    // Predicated region
    $region2: #{tpu_custom_call.1} parent=1 // pred_check
      _
    $region3: #{tpu_custom_call.1} parent=1 // pred_check_branch
      %16 = sbr.rel (0) target = $region5
    $region4: #{tpu_custom_call.1} parent=1 // pred_region
      %s18 = ssub.s32 256, 256
      %19 = vsyncadd [#allocation4], %s18
      %s20 = sshll.u32 [#allocation3], 4
      %s21 = int_to_ptr.vmem [resolvable:$true] %s20
      %26 = dma.hbm_to_vmem [thread:$0]  %s0, 256, %s21, [#allocation4], 128, 128, 8
    $region5: #{tpu_custom_call.1} parent=1 // pred_fallthru
      _
    // Predicated region
    $region6: #{tpu_custom_call.1} parent=1 // pred_check
      _
    $region7: #{tpu_custom_call.1} parent=1 // pred_check_branch
      %28 = sbr.rel (0) target = $region9
    $region8: #{tpu_custom_call.1} parent=1 // pred_region
      %s30 = ssub.s32 4096, 4096
      %31 = vsyncadd [#allocation7], %s30
      %s32 = sshll.u32 [#allocation6], 4
      %s33 = int_to_ptr.vmem [resolvable:$true] %s32
      %38 = dma.hbm_to_vmem [thread:$0]  %s1, 4096, %s33, [#allocation7], 256, 256, 16
    $region9: #{tpu_custom_call.1} parent=1 // pred_fallthru
      _
    // Predicated region
    $region10: #{tpu_custom_call.1} parent=1 // pred_check
      _
    $region11: #{tpu_custom_call.1} parent=1 // pred_check_branch
      %40 = sbr.rel (0) target = $region13
    $region12: #{tpu_custom_call.1} parent=1 // pred_region
      _
    $region13: #{tpu_custom_call.1} parent=1 // pred_fallthru
      _
    // Predicated region
    $region14: #{tpu_custom_call.1} parent=1 // pred_check
      _
    $region15: #{tpu_custom_call.1} parent=1 // pred_check_branch
      %42 = sbr.rel (0) target = $region17
    $region16: #{tpu_custom_call.1} parent=1 // pred_region
      %s44 = ssub.s32 4096, 4096
      %45 = vsyncadd [#allocation7], %s44
      %s46 = sshll.u32 [#allocation8], 4
      %s47 = int_to_ptr.vmem [resolvable:$true] %s46
      %52 = dma.hbm_to_vmem [thread:$0]  %s3, 4096, %s47, [#allocation7], 64, 64, 4
    $region17: #{tpu_custom_call.1} parent=1 // pred_fallthru
      _
    // Predicated region
    $region18: #{tpu_custom_call.1} parent=1 // pred_check
      _
    $region19: #{tpu_custom_call.1} parent=1 // pred_check_branch
      %54 = sbr.rel (0) target = $region21
    $region20: #{tpu_custom_call.1} parent=1 // pred_region
      _
    $region21: #{tpu_custom_call.1} parent=1 // pred_fallthru
      _
    // Predicated region
    $region22: #{tpu_custom_call.1} parent=1 // pred_check
      _
    $region23: #{tpu_custom_call.1} parent=1 // pred_check_branch
      %56 = sbr.rel (0) target = $region25
    $region24: #{tpu_custom_call.1} parent=1 // pred_region
      _
    $region25: #{tpu_custom_call.1} parent=1 // pred_fallthru
      _
    // Predicated region
    $region26: #{tpu_custom_call.1} parent=1 // pred_check
      _
    $region27: #{tpu_custom_call.1} parent=1 // pred_check_branch
      %58 = sbr.rel (0) target = $region29
    $region28: #{tpu_custom_call.1} parent=1 // pred_region
      _
    $region29: #{tpu_custom_call.1} parent=1 // pred_fallthru
      _
    // Predicated region
    $region30: #{tpu_custom_call.1} parent=1 // pred_check
      _
    $region31: #{tpu_custom_call.1} parent=1 // pred_check_branch
      %60 = sbr.rel (0) target = $region33
    $region32: #{tpu_custom_call.1} parent=1 // pred_region
      %61 = dma.done [#allocation4], 256
    $region33: #{tpu_custom_call.1} parent=1 // pred_fallthru
      _
    // Predicated region
    $region34: #{tpu_custom_call.1} parent=1 // pred_check
      _
    $region35: #{tpu_custom_call.1} parent=1 // pred_check_branch
      %63 = sbr.rel (0) target = $region37
    $region36: #{tpu_custom_call.1} parent=1 // pred_region
      %64 = dma.done [#allocation7], 4096
    $region37: #{tpu_custom_call.1} parent=1 // pred_fallthru
      _
    // Predicated region
    $region38: #{tpu_custom_call.1} parent=1 // pred_check
      _
    $region39: #{tpu_custom_call.1} parent=1 // pred_check_branch
      %66 = sbr.rel (0) target = $region41
    $region40: #{tpu_custom_call.1} parent=1 // pred_region
      %67 = dma.done [#allocation7], 4096
    $region41: #{tpu_custom_call.1} parent=1 // pred_fallthru
      _
    %p69 = scmp.eq.s32.totalorder 0, 0
    // Predicated region
    $region42: #{tpu_custom_call.1} parent=1 // pred_check
      %p70 = pneg %p69
    $region43: #{tpu_custom_call.1} parent=1 // pred_check_branch
      %72 = sbr.rel (%p70) target = $region45
    $region44: #{tpu_custom_call.1} parent=1 // pred_region
      %73 = vst [vmem:[#allocation2] sm:$0xff] 0.0
      %74 = vst [vmem:[#allocation2 + $0x8] sm:$0xff] 0.0
    $region45: #{tpu_custom_call.1} parent=1 // pred_fallthru
      _
    %v75 = vld [vmem:[#allocation3] sm:$0xff]
    %v76 = vld [vmem:[#allocation3 + $0x8] sm:$0xff]
    %v77 = vpack.c.bf16 %v76, %v75
    %v78 = vld [vmem:[#allocation6] sm:$0xff]
    %v79 = vld [vmem:[#allocation6 + $0x8] sm:$0xff]
    %v80 = vld [vmem:[#allocation6 + $0x10] sm:$0xff]
    %v81 = vld [vmem:[#allocation6 + $0x18] sm:$0xff]
    %v82 = vld [vmem:[#allocation6 + $0x20] sm:$0xff]
    %v83 = vld [vmem:[#allocation6 + $0x28] sm:$0xff]
    %v84 = vld [vmem:[#allocation6 + $0x30] sm:$0xff]
    %v85 = vld [vmem:[#allocation6 + $0x38] sm:$0xff]
    %v86 = vld [vmem:[#allocation6 + $0x40] sm:$0xff]
    %v87 = vld [vmem:[#allocation6 + $0x48] sm:$0xff]
    %v88 = vld [vmem:[#allocation6 + $0x50] sm:$0xff]
    %v89 = vld [vmem:[#allocation6 + $0x58] sm:$0xff]
    %v90 = vld [vmem:[#allocation6 + $0x60] sm:$0xff]
    %v91 = vld [vmem:[#allocation6 + $0x68] sm:$0xff]
    %v92 = vld [vmem:[#allocation6 + $0x70] sm:$0xff]
    %v93 = vld [vmem:[#allocation6 + $0x78] sm:$0xff]
    %v94 = vld [vmem:[#allocation6 + $0x80] sm:$0xff]
    %v95 = vld [vmem:[#allocation6 + $0x88] sm:$0xff]
    %v96 = vld [vmem:[#allocation6 + $0x90] sm:$0xff]
    %v97 = vld [vmem:[#allocation6 + $0x98] sm:$0xff]
    %v98 = vld [vmem:[#allocation6 + $0xa0] sm:$0xff]
    %v99 = vld [vmem:[#allocation6 + $0xa8] sm:$0xff]
    %v100 = vld [vmem:[#allocation6 + $0xb0] sm:$0xff]
    %v101 = vld [vmem:[#allocation6 + $0xb8] sm:$0xff]
    %v102 = vld [vmem:[#allocation6 + $0xc0] sm:$0xff]
    %v103 = vld [vmem:[#allocation6 + $0xc8] sm:$0xff]
    %v104 = vld [vmem:[#allocation6 + $0xd0] sm:$0xff]
    %v105 = vld [vmem:[#allocation6 + $0xd8] sm:$0xff]
    %v106 = vld [vmem:[#allocation6 + $0xe0] sm:$0xff]
    %v107 = vld [vmem:[#allocation6 + $0xe8] sm:$0xff]
    %v108 = vld [vmem:[#allocation6 + $0xf0] sm:$0xff]
    %v109 = vld [vmem:[#allocation6 + $0xf8] sm:$0xff]
    %v110 = vld [vmem:[%s2] sm:$0xf]
    %v112 = vlaneseq
    %v113 = vshrl.u32 %v112, 7
    %v114 = vsub.s32 0, %v113
    %v115 = vrot.slane %v110, %v114
    %v116 = vlaneseq
    %v117 = vshrl.u32 %v116, 7
    %v118 = vsub.s32 1, %v117
    %v119 = vrot.slane %v110, %v118
    %v120 = vlaneseq
    %v121 = vshrl.u32 %v120, 7
    %v122 = vsub.s32 2, %v121
    %v123 = vrot.slane %v110, %v122
    %v124 = vlaneseq
    %v125 = vshrl.u32 %v124, 7
    %v126 = vsub.s32 3, %v125
    %v127 = vrot.slane %v110, %v126
    %v164 = vunpack.c.l.b16 %v78
    %v165 = vunpack.c.h.b16 %v78
    %v166 = vunpack.c.l.b16 %v79
    %v167 = vunpack.c.h.b16 %v79
    %v168 = vunpack.c.l.b16 %v80
    %v169 = vunpack.c.h.b16 %v80
    %v170 = vunpack.c.l.b16 %v81
    %v171 = vunpack.c.h.b16 %v81
    %v172 = vunpack.c.l.b16 %v82
    %v173 = vunpack.c.h.b16 %v82
    %v174 = vunpack.c.l.b16 %v83
    %v175 = vunpack.c.h.b16 %v83
    %v176 = vunpack.c.l.b16 %v84
    %v177 = vunpack.c.h.b16 %v84
    %v178 = vunpack.c.l.b16 %v85
    %v179 = vunpack.c.h.b16 %v85
    %v180 = vunpack.c.l.b16 %v86
    %v181 = vunpack.c.h.b16 %v86
    %v182 = vunpack.c.l.b16 %v87
    %v183 = vunpack.c.h.b16 %v87
    %v184 = vunpack.c.l.b16 %v88
    %v185 = vunpack.c.h.b16 %v88
    %v186 = vunpack.c.l.b16 %v89
    %v187 = vunpack.c.h.b16 %v89
    %v188 = vunpack.c.l.b16 %v90
    %v189 = vunpack.c.h.b16 %v90
    %v190 = vunpack.c.l.b16 %v91
    %v191 = vunpack.c.h.b16 %v91
    %v192 = vunpack.c.l.b16 %v92
    %v193 = vunpack.c.h.b16 %v92
    %v194 = vunpack.c.l.b16 %v93
    %v195 = vunpack.c.h.b16 %v93
    %v196 = vunpack.c.l.b16 %v94
    %v197 = vunpack.c.h.b16 %v94
    %v198 = vunpack.c.l.b16 %v95
    %v199 = vunpack.c.h.b16 %v95
    %v200 = vunpack.c.l.b16 %v96
    %v201 = vunpack.c.h.b16 %v96
    %v202 = vunpack.c.l.b16 %v97
    %v203 = vunpack.c.h.b16 %v97
    %v204 = vunpack.c.l.b16 %v98
    %v205 = vunpack.c.h.b16 %v98
    %v206 = vunpack.c.l.b16 %v99
    %v207 = vunpack.c.h.b16 %v99
    %v208 = vunpack.c.l.b16 %v100
    %v209 = vunpack.c.h.b16 %v100
    %v210 = vunpack.c.l.b16 %v101
    %v211 = vunpack.c.h.b16 %v101
    %v212 = vunpack.c.l.b16 %v102
    %v213 = vunpack.c.h.b16 %v102
    %v214 = vunpack.c.l.b16 %v103
    %v215 = vunpack.c.h.b16 %v103
    %v216 = vunpack.c.l.b16 %v104
    %v217 = vunpack.c.h.b16 %v104
    %v218 = vunpack.c.l.b16 %v105
    %v219 = vunpack.c.h.b16 %v105
    %v220 = vunpack.c.l.b16 %v106
    %v221 = vunpack.c.h.b16 %v106
    %v222 = vunpack.c.l.b16 %v107
    %v223 = vunpack.c.h.b16 %v107
    %v224 = vunpack.c.l.b16 %v108
    %v225 = vunpack.c.h.b16 %v108
    %v226 = vunpack.c.l.b16 %v109
    %v227 = vunpack.c.h.b16 %v109
    %v228 = vpack.c.b16 %v168, %v164
    %v229 = vpack.c.b16 %v169, %v165
    %v230 = vpack.c.b16 %v170, %v166
    %v231 = vpack.c.b16 %v171, %v167
    %v232 = vpack.c.b16 %v176, %v172
    %v233 = vpack.c.b16 %v177, %v173
    %v234 = vpack.c.b16 %v178, %v174
    %v235 = vpack.c.b16 %v179, %v175
    %v236 = vpack.c.b16 %v184, %v180
    %v237 = vpack.c.b16 %v185, %v181
    %v238 = vpack.c.b16 %v186, %v182
    %v239 = vpack.c.b16 %v187, %v183
    %v240 = vpack.c.b16 %v192, %v188
    %v241 = vpack.c.b16 %v193, %v189
    %v242 = vpack.c.b16 %v194, %v190
    %v243 = vpack.c.b16 %v195, %v191
    %v244 = vpack.c.b16 %v200, %v196
    %v245 = vpack.c.b16 %v201, %v197
    %v246 = vpack.c.b16 %v202, %v198
    %v247 = vpack.c.b16 %v203, %v199
    %v248 = vpack.c.b16 %v208, %v204
    %v249 = vpack.c.b16 %v209, %v205
    %v250 = vpack.c.b16 %v210, %v206
    %v251 = vpack.c.b16 %v211, %v207
    %v252 = vpack.c.b16 %v216, %v212
    %v253 = vpack.c.b16 %v217, %v213
    %v254 = vpack.c.b16 %v218, %v214
    %v255 = vpack.c.b16 %v219, %v215
    %v256 = vpack.c.b16 %v224, %v220
    %v257 = vpack.c.b16 %v225, %v221
    %v258 = vpack.c.b16 %v226, %v222
    %v259 = vpack.c.b16 %v227, %v223
    %292 = vmatprep.subr.bf16.mxu0 %v229
    %293 = vmatpush1.bf16.msra.mxu0 %v228
    %294 = vmatprep.subr.bf16.mxu0 %v233
    %295 = vmatpush1.bf16.msra.mxu0 %v232
    %296 = vmatprep.subr.bf16.mxu0 %v237
    %297 = vmatpush1.bf16.msra.mxu0 %v236
    %298 = vmatprep.subr.bf16.mxu0 %v241
    %299 = vmatpush1.bf16.msra.mxu0 %v240
    %300 = vmatprep.subr.bf16.mxu0 %v245
    %301 = vmatpush1.bf16.msra.mxu0 %v244
    %302 = vmatprep.subr.bf16.mxu0 %v249
    %303 = vmatpush1.bf16.msra.mxu0 %v248
    %304 = vmatprep.subr.bf16.mxu0 %v253
    %305 = vmatpush1.bf16.msra.mxu0 %v252
    %306 = vmatprep.subr.bf16.mxu0 %v257
    %307 = vmatpush1.bf16.msra.mxu0 %v256
    %308 = vmatprep.subr.bf16.mxu0 0
    %309 = vmatpush1.bf16.msra.mxu0 0
    %310 = vmatprep.subr.bf16.mxu0 0
    %311 = vmatpush1.bf16.msra.mxu0 0
    %312 = vmatprep.subr.bf16.mxu0 0
    %313 = vmatpush1.bf16.msra.mxu0 0
    %314 = vmatprep.subr.bf16.mxu0 0
    %315 = vmatpush1.bf16.msra.mxu0 0
    %316 = vmatprep.subr.bf16.mxu0 0
    %317 = vmatpush1.bf16.msra.mxu0 0
    %318 = vmatprep.subr.bf16.mxu0 0
    %319 = vmatpush1.bf16.msra.mxu0 0
    %320 = vmatprep.subr.bf16.mxu0 0
    %321 = vmatpush1.bf16.msra.mxu0 0
    %322 = vmatprep.subr.bf16.mxu0 0
    %323 = vmatpush1.bf16.msra.mxu0 0
    %324 = vmatprep.mubr.bf16.mxu0 0
    %325 = vmatmul.mubr.bf16.gmra.mrb[0].mxu0 %v77
    %v326 = vpop.f32.mrb[0].mxu0
    %v327 = vadd.f32 %v115, %v326
    %v328 = vpop.f32.mrb[0].mxu0
    %v329 = vadd.f32 %v119, %v328
    %v330 = vpop.f32.mrb[0].mxu0
    %v331 = vadd.f32 %v115, %v330
    %v332 = vpop.f32.mrb[0].mxu0
    %v333 = vadd.f32 %v119, %v332
    %334 = vdwg.mxu0
    %335 = vmatprep.subr.bf16.mxu0 %v231
    %336 = vmatpush1.bf16.msra.mxu0 %v230
    %337 = vmatprep.subr.bf16.mxu0 %v235
    %338 = vmatpush1.bf16.msra.mxu0 %v234
    %339 = vmatprep.subr.bf16.mxu0 %v239
    %340 = vmatpush1.bf16.msra.mxu0 %v238
    %341 = vmatprep.subr.bf16.mxu0 %v243
    %342 = vmatpush1.bf16.msra.mxu0 %v242
    %343 = vmatprep.subr.bf16.mxu0 %v247
    %344 = vmatpush1.bf16.msra.mxu0 %v246
    %345 = vmatprep.subr.bf16.mxu0 %v251
    %346 = vmatpush1.bf16.msra.mxu0 %v250
    %347 = vmatprep.subr.bf16.mxu0 %v255
    %348 = vmatpush1.bf16.msra.mxu0 %v254
    %349 = vmatprep.subr.bf16.mxu0 %v259
    %350 = vmatpush1.bf16.msra.mxu0 %v258
    %351 = vmatprep.subr.bf16.mxu0 0
    %352 = vmatpush1.bf16.msra.mxu0 0
    %353 = vmatprep.subr.bf16.mxu0 0
    %354 = vmatpush1.bf16.msra.mxu0 0
    %355 = vmatprep.subr.bf16.mxu0 0
    %356 = vmatpush1.bf16.msra.mxu0 0
    %357 = vmatprep.subr.bf16.mxu0 0
    %358 = vmatpush1.bf16.msra.mxu0 0
    %359 = vmatprep.subr.bf16.mxu0 0
    %360 = vmatpush1.bf16.msra.mxu0 0
    %361 = vmatprep.subr.bf16.mxu0 0
    %362 = vmatpush1.bf16.msra.mxu0 0
    %363 = vmatprep.subr.bf16.mxu0 0
    %364 = vmatpush1.bf16.msra.mxu0 0
    %365 = vmatprep.subr.bf16.mxu0 0
    %366 = vmatpush1.bf16.msra.mxu0 0
    %367 = vmatprep.mubr.bf16.mxu0 0
    %368 = vmatmul.mubr.bf16.gmra.mrb[0].mxu0 %v77
    %v369 = vpop.f32.mrb[0].mxu0
    %v370 = vadd.f32 %v123, %v369
    %v371 = vpop.f32.mrb[0].mxu0
    %v372 = vadd.f32 %v127, %v371
    %v373 = vpop.f32.mrb[0].mxu0
    %v374 = vadd.f32 %v123, %v373
    %v375 = vpop.f32.mrb[0].mxu0
    %v376 = vadd.f32 %v127, %v375
    %377 = vdwg.mxu0
    %v378 = vmax.f32 %v327, 0.0
    %v379 = vmax.f32 %v329, 0.0
    %v380 = vmax.f32 %v370, 0.0
    %v381 = vmax.f32 %v372, 0.0
    %v382 = vmax.f32 %v331, 0.0
    %v383 = vmax.f32 %v333, 0.0
    %v384 = vmax.f32 %v374, 0.0
    %v385 = vmax.f32 %v376, 0.0
    %v386 = vld [vmem:[#allocation2] sm:$0xff]
    %v387 = vld [vmem:[#allocation2 + $0x8] sm:$0xff]
    %v388 = vpack.c.bf16 %v382, %v378
    %v389 = vpack.c.bf16 %v383, %v379
    %v390 = vpack.c.bf16 %v384, %v380
    %v391 = vpack.c.bf16 %v385, %v381
    %v392 = vld [vmem:[#allocation8] sm:$0xf]
    %v393 = vld [vmem:[#allocation8 + $0x4] sm:$0xf]
    %v394 = vld [vmem:[#allocation8 + $0x8] sm:$0xf]
    %v395 = vld [vmem:[#allocation8 + $0xc] sm:$0xf]
    %v396 = vld [vmem:[#allocation8 + $0x10] sm:$0xf]
    %v397 = vld [vmem:[#allocation8 + $0x14] sm:$0xf]
    %v398 = vld [vmem:[#allocation8 + $0x18] sm:$0xf]
    %v399 = vld [vmem:[#allocation8 + $0x1c] sm:$0xf]
    %v400 = vld [vmem:[#allocation8 + $0x20] sm:$0xf]
    %v401 = vld [vmem:[#allocation8 + $0x24] sm:$0xf]
    %v402 = vld [vmem:[#allocation8 + $0x28] sm:$0xf]
    %v403 = vld [vmem:[#allocation8 + $0x2c] sm:$0xf]
    %v404 = vld [vmem:[#allocation8 + $0x30] sm:$0xf]
    %v405 = vld [vmem:[#allocation8 + $0x34] sm:$0xf]
    %v406 = vld [vmem:[#allocation8 + $0x38] sm:$0xf]
    %v407 = vld [vmem:[#allocation8 + $0x3c] sm:$0xf]
    %v408 = vld [vmem:[#allocation8 + $0x40] sm:$0xf]
    %v409 = vld [vmem:[#allocation8 + $0x44] sm:$0xf]
    %v410 = vld [vmem:[#allocation8 + $0x48] sm:$0xf]
    %v411 = vld [vmem:[#allocation8 + $0x4c] sm:$0xf]
    %v412 = vld [vmem:[#allocation8 + $0x50] sm:$0xf]
    %v413 = vld [vmem:[#allocation8 + $0x54] sm:$0xf]
    %v414 = vld [vmem:[#allocation8 + $0x58] sm:$0xf]
    %v415 = vld [vmem:[#allocation8 + $0x5c] sm:$0xf]
    %v416 = vld [vmem:[#allocation8 + $0x60] sm:$0xf]
    %v417 = vld [vmem:[#allocation8 + $0x64] sm:$0xf]
    %v418 = vld [vmem:[#allocation8 + $0x68] sm:$0xf]
    %v419 = vld [vmem:[#allocation8 + $0x6c] sm:$0xf]
    %v420 = vld [vmem:[#allocation8 + $0x70] sm:$0xf]
    %v421 = vld [vmem:[#allocation8 + $0x74] sm:$0xf]
    %v422 = vld [vmem:[#allocation8 + $0x78] sm:$0xf]
    %v423 = vld [vmem:[#allocation8 + $0x7c] sm:$0xf]
    %v424 = vld [vmem:[#allocation8 + $0x80] sm:$0xf]
    %v425 = vld [vmem:[#allocation8 + $0x84] sm:$0xf]
    %v426 = vld [vmem:[#allocation8 + $0x88] sm:$0xf]
    %v427 = vld [vmem:[#allocation8 + $0x8c] sm:$0xf]
    %v428 = vld [vmem:[#allocation8 + $0x90] sm:$0xf]
    %v429 = vld [vmem:[#allocation8 + $0x94] sm:$0xf]
    %v430 = vld [vmem:[#allocation8 + $0x98] sm:$0xf]
    %v431 = vld [vmem:[#allocation8 + $0x9c] sm:$0xf]
    %v432 = vld [vmem:[#allocation8 + $0xa0] sm:$0xf]
    %v433 = vld [vmem:[#allocation8 + $0xa4] sm:$0xf]
    %v434 = vld [vmem:[#allocation8 + $0xa8] sm:$0xf]
    %v435 = vld [vmem:[#allocation8 + $0xac] sm:$0xf]
    %v436 = vld [vmem:[#allocation8 + $0xb0] sm:$0xf]
    %v437 = vld [vmem:[#allocation8 + $0xb4] sm:$0xf]
    %v438 = vld [vmem:[#allocation8 + $0xb8] sm:$0xf]
    %v439 = vld [vmem:[#allocation8 + $0xbc] sm:$0xf]
    %v440 = vld [vmem:[#allocation8 + $0xc0] sm:$0xf]
    %v441 = vld [vmem:[#allocation8 + $0xc4] sm:$0xf]
    %v442 = vld [vmem:[#allocation8 + $0xc8] sm:$0xf]
    %v443 = vld [vmem:[#allocation8 + $0xcc] sm:$0xf]
    %v444 = vld [vmem:[#allocation8 + $0xd0] sm:$0xf]
    %v445 = vld [vmem:[#allocation8 + $0xd4] sm:$0xf]
    %v446 = vld [vmem:[#allocation8 + $0xd8] sm:$0xf]
    %v447 = vld [vmem:[#allocation8 + $0xdc] sm:$0xf]
    %v448 = vld [vmem:[#allocation8 + $0xe0] sm:$0xf]
    %v449 = vld [vmem:[#allocation8 + $0xe4] sm:$0xf]
    %v450 = vld [vmem:[#allocation8 + $0xe8] sm:$0xf]
    %v451 = vld [vmem:[#allocation8 + $0xec] sm:$0xf]
    %v452 = vld [vmem:[#allocation8 + $0xf0] sm:$0xf]
    %v453 = vld [vmem:[#allocation8 + $0xf4] sm:$0xf]
    %v454 = vld [vmem:[#allocation8 + $0xf8] sm:$0xf]
    %v455 = vld [vmem:[#allocation8 + $0xfc] sm:$0xf]
    %v520 = vunpack.c.l.b16 %v392
    %v521 = vunpack.c.l.b16 %v393
    %v522 = vunpack.c.l.b16 %v394
    %v523 = vunpack.c.l.b16 %v395
    %v524 = vunpack.c.l.b16 %v396
    %v525 = vunpack.c.l.b16 %v397
    %v526 = vunpack.c.l.b16 %v398
    %v527 = vunpack.c.l.b16 %v399
    %v528 = vunpack.c.l.b16 %v400
    %v529 = vunpack.c.l.b16 %v401
    %v530 = vunpack.c.l.b16 %v402
    %v531 = vunpack.c.l.b16 %v403
    %v532 = vunpack.c.l.b16 %v404
    %v533 = vunpack.c.l.b16 %v405
    %v534 = vunpack.c.l.b16 %v406
    %v535 = vunpack.c.l.b16 %v407
    %v536 = vunpack.c.l.b16 %v408
    %v537 = vunpack.c.l.b16 %v409
    %v538 = vunpack.c.l.b16 %v410
    %v539 = vunpack.c.l.b16 %v411
    %v540 = vunpack.c.l.b16 %v412
    %v541 = vunpack.c.l.b16 %v413
    %v542 = vunpack.c.l.b16 %v414
    %v543 = vunpack.c.l.b16 %v415
    %v544 = vunpack.c.l.b16 %v416
    %v545 = vunpack.c.l.b16 %v417
    %v546 = vunpack.c.l.b16 %v418
    %v547 = vunpack.c.l.b16 %v419
    %v548 = vunpack.c.l.b16 %v420
    %v549 = vunpack.c.l.b16 %v421
    %v550 = vunpack.c.l.b16 %v422
    %v551 = vunpack.c.l.b16 %v423
    %v552 = vunpack.c.l.b16 %v424
    %v553 = vunpack.c.l.b16 %v425
    %v554 = vunpack.c.l.b16 %v426
    %v555 = vunpack.c.l.b16 %v427
    %v556 = vunpack.c.l.b16 %v428
    %v557 = vunpack.c.l.b16 %v429
    %v558 = vunpack.c.l.b16 %v430
    %v559 = vunpack.c.l.b16 %v431
    %v560 = vunpack.c.l.b16 %v432
    %v561 = vunpack.c.l.b16 %v433
    %v562 = vunpack.c.l.b16 %v434
    %v563 = vunpack.c.l.b16 %v435
    %v564 = vunpack.c.l.b16 %v436
    %v565 = vunpack.c.l.b16 %v437
    %v566 = vunpack.c.l.b16 %v438
    %v567 = vunpack.c.l.b16 %v439
    %v568 = vunpack.c.l.b16 %v440
    %v569 = vunpack.c.l.b16 %v441
    %v570 = vunpack.c.l.b16 %v442
    %v571 = vunpack.c.l.b16 %v443
    %v572 = vunpack.c.l.b16 %v444
    %v573 = vunpack.c.l.b16 %v445
    %v574 = vunpack.c.l.b16 %v446
    %v575 = vunpack.c.l.b16 %v447
    %v576 = vunpack.c.l.b16 %v448
    %v577 = vunpack.c.l.b16 %v449
    %v578 = vunpack.c.l.b16 %v450
    %v579 = vunpack.c.l.b16 %v451
    %v580 = vunpack.c.l.b16 %v452
    %v581 = vunpack.c.l.b16 %v453
    %v582 = vunpack.c.l.b16 %v454
    %v583 = vunpack.c.l.b16 %v455
    %v584 = vpack.c.b16 %v521, %v520
    %v585 = vpack.c.b16 %v523, %v522
    %v586 = vpack.c.b16 %v525, %v524
    %v587 = vpack.c.b16 %v527, %v526
    %v588 = vpack.c.b16 %v529, %v528
    %v589 = vpack.c.b16 %v531, %v530
    %v590 = vpack.c.b16 %v533, %v532
    %v591 = vpack.c.b16 %v535, %v534
    %v592 = vpack.c.b16 %v537, %v536
    %v593 = vpack.c.b16 %v539, %v538
    %v594 = vpack.c.b16 %v541, %v540
    %v595 = vpack.c.b16 %v543, %v542
    %v596 = vpack.c.b16 %v545, %v544
    %v597 = vpack.c.b16 %v547, %v546
    %v598 = vpack.c.b16 %v549, %v548
    %v599 = vpack.c.b16 %v551, %v550
    %v600 = vpack.c.b16 %v553, %v552
    %v601 = vpack.c.b16 %v555, %v554
    %v602 = vpack.c.b16 %v557, %v556
    %v603 = vpack.c.b16 %v559, %v558
    %v604 = vpack.c.b16 %v561, %v560
    %v605 = vpack.c.b16 %v563, %v562
    %v606 = vpack.c.b16 %v565, %v564
    %v607 = vpack.c.b16 %v567, %v566
    %v608 = vpack.c.b16 %v569, %v568
    %v609 = vpack.c.b16 %v571, %v570
    %v610 = vpack.c.b16 %v573, %v572
    %v611 = vpack.c.b16 %v575, %v574
    %v612 = vpack.c.b16 %v577, %v576
    %v613 = vpack.c.b16 %v579, %v578
    %v614 = vpack.c.b16 %v581, %v580
    %v615 = vpack.c.b16 %v583, %v582
    %648 = vmatprep.subr.bf16.mxu0 0
    %649 = vmatpush1.bf16.msra.mxu0 %v584
    %650 = vmatprep.subr.bf16.mxu0 0
    %651 = vmatpush1.bf16.msra.mxu0 %v585
    %652 = vmatprep.subr.bf16.mxu0 0
    %653 = vmatpush1.bf16.msra.mxu0 %v586
    %654 = vmatprep.subr.bf16.mxu0 0
    %655 = vmatpush1.bf16.msra.mxu0 %v587
    %656 = vmatprep.subr.bf16.mxu0 0
    %657 = vmatpush1.bf16.msra.mxu0 %v588
    %658 = vmatprep.subr.bf16.mxu0 0
    %659 = vmatpush1.bf16.msra.mxu0 %v589
    %660 = vmatprep.subr.bf16.mxu0 0
    %661 = vmatpush1.bf16.msra.mxu0 %v590
    %662 = vmatprep.subr.bf16.mxu0 0
    %663 = vmatpush1.bf16.msra.mxu0 %v591
    %664 = vmatprep.subr.bf16.mxu0 0
    %665 = vmatpush1.bf16.msra.mxu0 %v592
    %666 = vmatprep.subr.bf16.mxu0 0
    %667 = vmatpush1.bf16.msra.mxu0 %v593
    %668 = vmatprep.subr.bf16.mxu0 0
    %669 = vmatpush1.bf16.msra.mxu0 %v594
    %670 = vmatprep.subr.bf16.mxu0 0
    %671 = vmatpush1.bf16.msra.mxu0 %v595
    %672 = vmatprep.subr.bf16.mxu0 0
    %673 = vmatpush1.bf16.msra.mxu0 %v596
    %674 = vmatprep.subr.bf16.mxu0 0
    %675 = vmatpush1.bf16.msra.mxu0 %v597
    %676 = vmatprep.subr.bf16.mxu0 0
    %677 = vmatpush1.bf16.msra.mxu0 %v598
    %678 = vmatprep.subr.bf16.mxu0 0
    %679 = vmatpush1.bf16.msra.mxu0 %v599
    %680 = vmatprep.mubr.bf16.mxu0 %v389
    %681 = vmatmul.mubr.bf16.gmra.mrb[0].mxu0 %v388
    %v682 = vpop.f32.mrb[0].mxu0
    %v683 = vadd.f32 0.0, %v682
    %v684 = vpop.f32.mrb[0].mxu0
    %v685 = vpop.f32.mrb[0].mxu0
    %v686 = vadd.f32 0.0, %v685
    %v687 = vpop.f32.mrb[0].mxu0
    %688 = vdwg.mxu0
    %689 = vmatprep.subr.bf16.mxu0 0
    %690 = vmatpush1.bf16.msra.mxu0 %v600
    %691 = vmatprep.subr.bf16.mxu0 0
    %692 = vmatpush1.bf16.msra.mxu0 %v601
    %693 = vmatprep.subr.bf16.mxu0 0
    %694 = vmatpush1.bf16.msra.mxu0 %v602
    %695 = vmatprep.subr.bf16.mxu0 0
    %696 = vmatpush1.bf16.msra.mxu0 %v603
    %697 = vmatprep.subr.bf16.mxu0 0
    %698 = vmatpush1.bf16.msra.mxu0 %v604
    %699 = vmatprep.subr.bf16.mxu0 0
    %700 = vmatpush1.bf16.msra.mxu0 %v605
    %701 = vmatprep.subr.bf16.mxu0 0
    %702 = vmatpush1.bf16.msra.mxu0 %v606
    %703 = vmatprep.subr.bf16.mxu0 0
    %704 = vmatpush1.bf16.msra.mxu0 %v607
    %705 = vmatprep.subr.bf16.mxu0 0
    %706 = vmatpush1.bf16.msra.mxu0 %v608
    %707 = vmatprep.subr.bf16.mxu0 0
    %708 = vmatpush1.bf16.msra.mxu0 %v609
    %709 = vmatprep.subr.bf16.mxu0 0
    %710 = vmatpush1.bf16.msra.mxu0 %v610
    %711 = vmatprep.subr.bf16.mxu0 0
    %712 = vmatpush1.bf16.msra.mxu0 %v611
    %713 = vmatprep.subr.bf16.mxu0 0
    %714 = vmatpush1.bf16.msra.mxu0 %v612
    %715 = vmatprep.subr.bf16.mxu0 0
    %716 = vmatpush1.bf16.msra.mxu0 %v613
    %717 = vmatprep.subr.bf16.mxu0 0
    %718 = vmatpush1.bf16.msra.mxu0 %v614
    %719 = vmatprep.subr.bf16.mxu0 0
    %720 = vmatpush1.bf16.msra.mxu0 %v615
    %721 = vmatprep.mubr.bf16.mxu0 %v391
    %722 = vmatmul.mubr.bf16.gmra.mrb[0].mxu0 %v390
    %v723 = vpop.f32.mrb[0].mxu0
    %v724 = vadd.f32 %v683, %v723
    %v725 = vpop.f32.mrb[0].mxu0
    %v726 = vpop.f32.mrb[0].mxu0
    %v727 = vadd.f32 %v686, %v726
    %v728 = vpop.f32.mrb[0].mxu0
    %729 = vdwg.mxu0
    %v730 = vadd.f32 %v386, %v724
    %v731 = vadd.f32 %v387, %v727
    %732 = vst [vmem:[#allocation2] sm:$0xff] %v730
    %733 = vst [vmem:[#allocation2 + $0x8] sm:$0xff] %v731
    // Predicated region
    $region46: #{tpu_custom_call.1} parent=1 // pred_check
      %p734 = pneg %p69
    $region47: #{tpu_custom_call.1} parent=1 // pred_check_branch
      %736 = sbr.rel (%p734) target = $region49
    $region48: #{tpu_custom_call.1} parent=1 // pred_region
      %v737 = vld [vmem:[#allocation2] sm:$0xff]
      %v738 = vld [vmem:[#allocation2 + $0x8] sm:$0xff]
      %v739 = vld [vmem:[%s4] sm:$0x1]
      %v741 = vlaneseq
      %v742 = vshrl.u32 %v741, 7
      %v743 = vsub.s32 0, %v742
      %v744 = vrot.slane %v739, %v743
      %v746 = vadd.f32 %v737, %v744
      %v747 = vadd.f32 %v738, %v744
      %v748 = vadd.f32 %v75, %v746
      %v749 = vadd.f32 %v76, %v747
      %750 = vadd.xlane.f32.xlu0 %v748
      %v751 = vpop.xlane.xlu0 %750
      %752 = vadd.xlane.f32.xlu0 %v749
      %v753 = vpop.xlane.xlu0 %752
      %v754 = vrcp.pop 128.0
      %v755 = vmul.f32 %v751, %v754
      %v756 = vmul.f32 %v753, %v754
      %v757 = vsub.f32 %v748, %v755
      %v758 = vsub.f32 %v749, %v756
      %v759 = vmul.f32 %v757, %v757
      %v760 = vmul.f32 %v758, %v758
      %761 = vadd.xlane.f32.xlu0 %v759
      %v762 = vpop.xlane.xlu0 %761
      %763 = vadd.xlane.f32.xlu0 %v760
      %v764 = vpop.xlane.xlu0 %763
      %v765 = vmul.f32 %v762, %v754
      %v766 = vmul.f32 %v764, %v754
      %v767 = vadd.f32 %v765, 1e-05
      %v768 = vadd.f32 %v766, 1e-05
      %v769 = vrsqrt.pop %v767
      %v770 = vrsqrt.pop %v768
      %v771 = vmul.f32 %v757, %v769
      %v772 = vmul.f32 %v758, %v770
      %v773 = vld [vmem:[%s5] sm:$0x1]
      %v775 = vlaneseq
      %v776 = vshrl.u32 %v775, 7
      %v777 = vsub.s32 0, %v776
      %v778 = vrot.slane %v773, %v777
      %v780 = vmul.f32 %v771, %v778
      %v781 = vmul.f32 %v772, %v778
      %v782 = vld [vmem:[%s6] sm:$0x1]
      %v784 = vlaneseq
      %v785 = vshrl.u32 %v784, 7
      %v786 = vsub.s32 0, %v785
      %v787 = vrot.slane %v782, %v786
      %v789 = vadd.f32 %v780, %v787
      %v790 = vadd.f32 %v781, %v787
      %791 = vst [vmem:[#allocation9] sm:$0xff] %v789
      %792 = vst [vmem:[#allocation9 + $0x8] sm:$0xff] %v790
    $region49: #{tpu_custom_call.1} parent=1 // pred_fallthru
      _
    // Predicated region
    $region50: #{tpu_custom_call.1} parent=1 // pred_check
      _
    $region51: #{tpu_custom_call.1} parent=1 // pred_check_branch
      %794 = sbr.rel (0) target = $region53
    $region52: #{tpu_custom_call.1} parent=1 // pred_region
      %s796 = ssub.s32 256, 256
      %797 = vsyncadd [#allocation5], %s796
      %s798 = sshll.u32 [#allocation9], 4
      %s799 = int_to_ptr.vmem [resolvable:$true] %s798
      %804 = dma.vmem_to_hbm [thread:$0]  %s799, 256, %s7, [#allocation5], 128, 128, 8
    $region53: #{tpu_custom_call.1} parent=1 // pred_fallthru
      _
    // Predicated region
    $region54: #{tpu_custom_call.1} parent=1 // pred_check
      _
    $region55: #{tpu_custom_call.1} parent=1 // pred_check_branch
      %806 = sbr.rel (0) target = $region57
    $region56: #{tpu_custom_call.1} parent=1 // pred_region
      %807 = dma.done [#allocation5], 256
    $region57: #{tpu_custom_call.1} parent=1 // pred_fallthru
      _
    %808 = vsyncpa [#allocation4], 1
    %809 = vsyncpa [#allocation7], 1
    %810 = vsyncpa [#allocation5], 1

</llo_original>
